<compile_context>
chip_gen: v7x
topology: tpu7x:2x2x1
jax: 0.10.0
libtpu: 0.0.40
codegen_flags: <defaults>
</compile_context>

<pallas_src>
import functools

import jax
import jax.numpy as jnp
from jax.experimental import pallas as pl
from jax.experimental.pallas import tpu as pltpu


def _sign(x):
    # torch.sign semantics: -1 / 0 / +1.
    return jnp.where(x > 0, 1.0, jnp.where(x < 0, -1.0, 0.0))


def forest_kernel(xt_ref, w_ref, b_ref, label_ref, post_ref,
                  out_ref, outlist_ref, pred_ref, *, depth, n_trees):
    T = n_trees

    xt = xt_ref[...]                       # (F, TILE_B)   batch on lanes
    w = w_ref[...]                         # (N*T, F)      node-major, tree minor

    # Fused routing linear layer for every internal node of every tree:
    # one MXU push, one broadcast bias add, one sigmoid over the whole slab.
    f = jnp.dot(w, xt, preferred_element_type=jnp.float32)   # (N*T, TILE_B)
    d = jax.nn.sigmoid(f + b_ref[...])                       # bias (N*T, 1)

    label_t = label_ref[...]               # (T, L) = tanh(pi), precomputed
    tile_b = xt.shape[1]

    # DecisionTree.set_mu recursion (left = d, right = 1 - d), unrolled at
    # trace time.  Per-tree outputs r are accumulated directly at the leaves.
    def rec(prob, node, dep, leaf, acc):
        if dep == depth:
            return acc + prob * label_t[:, leaf:leaf + 1]     # (T,TILE_B)*(T,1)
        d_n = d[node * T:(node + 1) * T, :]                   # (T, TILE_B)
        half = 2 ** (depth - dep - 1)
        acc = rec(prob * d_n, 2 * node + 1, dep + 1, leaf, acc)
        acc = rec(prob * (1.0 - d_n), 2 * node + 2, dep + 1, leaf + half, acc)
        return acc

    r = rec(jnp.ones((T, tile_b), jnp.float32), 0, 0, 0,
            jnp.zeros((T, tile_b), jnp.float32))              # (T, TILE_B)

    outlist_ref[...] = r                                      # out_list^T

    # Majority vote with precomputed softmax posterior (T, 1).
    post = post_ref[...]
    out_ref[...] = jnp.sum(r * post, axis=0, keepdims=True)               # (1, TILE_B)
    pred_ref[...] = _sign(
        jnp.sum(_sign(r) * post, axis=0, keepdims=True)).astype(jnp.int32)


def forest_forward(x, w, b, pi, post_logits, *, depth, tile_b=128,
                   matmul_dtype=jnp.float32):
    """x: (B, F); w: (T, N, F); b: (T, N); pi: (T, L); post_logits: (1, T)."""
    B, F = x.shape
    T, N, _ = w.shape
    L = 2 ** depth
    assert N == 2 ** depth - 1

    # --- parameter-only preprocessing, hoisted out of the kernel -------------
    w_flat = jnp.transpose(w, (1, 0, 2)).reshape(N * T, F)    # row = n*T + t
    b_flat = jnp.transpose(b, (1, 0)).reshape(N * T, 1)
    label_t = jnp.tanh(pi)                                    # (T, L)
    post_col = jax.nn.softmax(post_logits, axis=1).reshape(T, 1)

    # --- batch on lanes, padded to the batch tile size ------------------------
    tile_b = min(tile_b, max(B, 8))
    b_pad = pl.cdiv(B, tile_b) * tile_b
    if b_pad != B:
        x = jnp.pad(x, ((0, b_pad - B), (0, 0)))
    xt = jnp.transpose(x).astype(matmul_dtype)                # (F, B_pad)
    w_flat = w_flat.astype(matmul_dtype)   # bf16 here halves traffic on v5e/v6e/v7x

    grid = (b_pad // tile_b,)
    out_shapes = (
        jax.ShapeDtypeStruct((1, b_pad), jnp.float32),        # out^T
        jax.ShapeDtypeStruct((T, b_pad), jnp.float32),        # out_list^T
        jax.ShapeDtypeStruct((1, b_pad), jnp.int32),          # pred^T
    )
    grid_spec = pltpu.PrefetchScalarGridSpec(
        num_scalar_prefetch=0,
        grid=grid,
        in_specs=[
            pl.BlockSpec((F, tile_b), lambda i: (0, i)),      # x^T tile (pipelined)
            pl.BlockSpec((N * T, F), lambda i: (0, 0)),       # weights (resident)
            pl.BlockSpec((N * T, 1), lambda i: (0, 0)),       # bias (resident)
            pl.BlockSpec((T, L), lambda i: (0, 0)),           # tanh(pi) (resident)
            pl.BlockSpec((T, 1), lambda i: (0, 0)),           # softmax(post_) (resident)
        ],
        out_specs=[
            pl.BlockSpec((1, tile_b), lambda i: (0, i)),
            pl.BlockSpec((T, tile_b), lambda i: (0, i)),
            pl.BlockSpec((1, tile_b), lambda i: (0, i)),
        ],
    )
    out_t, outlist_t, pred_t = pl.pallas_call(
        functools.partial(forest_kernel, depth=depth, n_trees=T),
        out_shape=out_shapes,
        grid_spec=grid_spec,
        compiler_params=pltpu.CompilerParams(
            dimension_semantics=("parallel",),      # megacore sharding on v7x
            vmem_limit_bytes=48 * 1024 * 1024,      # headroom for v7x 64 MiB VMEM
        ),
    )(xt, w_flat, b_flat, label_t, post_col)

    # Back to the PyTorch (batch-major) convention.
    out = jnp.transpose(out_t)[:B]           # (B, 1)
    out_list = jnp.transpose(outlist_t)[:B]  # (B, T)
    pred = jnp.transpose(pred_t)[:B]         # (B, 1)
    return out, out_list, pred


def reference_forward(x, w, b, pi, post_logits, *, depth):
    # Pure-JAX reference, same semantics as the PyTorch Module (signed=True,
    # learn_post=False, init_prior=False).
    f = jnp.einsum('bf,tnf->btn', x, w) + b[None]        # (B, T, N)
    d = jax.nn.sigmoid(f)

    def leaves(prob, node, dep):
        if dep == depth:
            return [prob]
        return (leaves(prob * d[..., node], 2 * node + 1, dep + 1)
                + leaves(prob * (1.0 - d[..., node]), 2 * node + 2, dep + 1))

    leaf = jnp.stack(leaves(jnp.ones(d.shape[:2]), 0, 0), axis=-1)   # (B,T,L)
    r = jnp.einsum('btl,tl->bt', leaf, jnp.tanh(pi))                 # (B, T)
    post = jax.nn.softmax(post_logits, axis=1)                       # (1, T)
    out = jnp.sum(r * post, axis=1, keepdims=True)
    pred = jnp.sign(jnp.sum(jnp.sign(r) * post, axis=1,
                            keepdims=True)).astype(jnp.int32)
    return out, r, pred


if __name__ == "__main__":
    # Small, module-consistent shapes (batch padded to a lane-dense tile).
    B, F = 256, 16        # batch, n_features
    T = 32                # sample_size (number of trees)
    DEPTH = 3
    N = 2 ** DEPTH - 1    # internal nodes per tree
    L = 2 ** DEPTH        # leaves per tree

    key = jax.random.PRNGKey(0)
    kx, kw, kpi = jax.random.split(key, 3)

    x = jax.random.normal(kx, (B, F), dtype=jnp.float32)

    # Deterministic, shape-faithful parameter init (xavier-normal like init_f).
    std_w = (2.0 / (F + N)) ** 0.5          # f_linear: (N, F) per tree
    std_pi = (2.0 / (1 + L)) ** 0.5         # pi: (1, L) per tree
    w = jax.random.normal(kw, (T, N, F), dtype=jnp.float32) * std_w
    b = jnp.zeros((T, N), dtype=jnp.float32)
    pi = jax.random.normal(kpi, (T, L), dtype=jnp.float32) * std_pi
    post_logits = jnp.ones((1, T), dtype=jnp.float32)   # post_ (all ones)

    # f_mask is computed in init_f but never used in forward -> omitted.
    # KL divergence term (self.div) is parameter-only; with uniform prior and
    # all-ones post_ it is exactly 0 — computed in plain JAX.
    post = jax.nn.softmax(post_logits, axis=1)
    prior = jnp.full((1, T), 1.0 / T, dtype=jnp.float32)
    div = jnp.sum(post * jnp.log(post / prior))

    out, out_list, pred = forest_forward(x, w, b, pi, post_logits, depth=DEPTH)
    jax.block_until_ready((out, out_list, pred))

    out_r, out_list_r, pred_r = reference_forward(x, w, b, pi, post_logits,
                                                  depth=DEPTH)
    assert jnp.allclose(out, out_r, atol=1e-5, rtol=1e-5)
    assert jnp.allclose(out_list, out_list_r, atol=1e-5, rtol=1e-5)
    assert jnp.array_equal(pred, pred_r)
    assert abs(float(div)) < 1e-6

    print("KERNEL_OK")
</pallas_src>

<mosaic_0001>
module attributes {stable_mosaic.version = 11 : i64} {
  func.func @forest_kernel(%arg0: i32, %arg1: memref<16x128xf32, #tpu.memory_space<vmem>>, %arg2: memref<224x16xf32, #tpu.memory_space<vmem>>, %arg3: memref<224x1xf32, #tpu.memory_space<vmem>>, %arg4: memref<32x8xf32, #tpu.memory_space<vmem>>, %arg5: memref<32x1xf32, #tpu.memory_space<vmem>>, %arg6: memref<1x128xf32, #tpu.memory_space<vmem>>, %arg7: memref<32x128xf32, #tpu.memory_space<vmem>>, %arg8: memref<1x128xi32, #tpu.memory_space<vmem>>) attributes {dimension_semantics = [#tpu.dimension_semantics<parallel>], iteration_bounds = array<i64: 2>, scalar_prefetch = 0 : i64, scratch_operands = 0 : i64, tpu.core_type = #tpu.core_type<tc>, window_params = [{transform_indices = @transform_0, window_bounds = array<i64: 16, 128>}, {pipeline_mode = #tpu.pipeline_mode<synchronous>, transform_indices = @transform_1, window_bounds = array<i64: 224, 16>}, {pipeline_mode = #tpu.pipeline_mode<synchronous>, transform_indices = @transform_2, window_bounds = array<i64: 224, 1>}, {pipeline_mode = #tpu.pipeline_mode<synchronous>, transform_indices = @transform_3, window_bounds = array<i64: 32, 8>}, {pipeline_mode = #tpu.pipeline_mode<synchronous>, transform_indices = @transform_4, window_bounds = array<i64: 32, 1>}, {transform_indices = @transform_5, window_bounds = array<i64: 1, 128>}, {transform_indices = @transform_6, window_bounds = array<i64: 32, 128>}, {transform_indices = @transform_7, window_bounds = array<i64: 1, 128>}]} {
    %c0 = arith.constant 0 : index
    %c0_0 = arith.constant 0 : index
    %0 = vector.load %arg1[%c0, %c0_0] : memref<16x128xf32, #tpu.memory_space<vmem>>, vector<16x128xf32>
    %c0_1 = arith.constant 0 : index
    %c0_2 = arith.constant 0 : index
    %1 = vector.load %arg2[%c0_1, %c0_2] : memref<224x16xf32, #tpu.memory_space<vmem>>, vector<224x16xf32>
    %cst = arith.constant dense<0.000000e+00> : vector<224x128xf32>
    %2 = tpu.matmul %1, %0, %cst {dimension_numbers = #tpu.dot_dimension_numbers<[1], [0], [0], [1], [0, 0, 1, 1], [], []>} : vector<224x16xf32>, vector<16x128xf32>, vector<224x128xf32> -> vector<224x128xf32>
    %c0_3 = arith.constant 0 : index
    %c0_4 = arith.constant 0 : index
    %3 = vector.load %arg3[%c0_3, %c0_4] : memref<224x1xf32, #tpu.memory_space<vmem>>, vector<224x1xf32>
    %4 = vector.broadcast %3 : vector<224x1xf32> to vector<224x128xf32>
    %5 = arith.addf %2, %4 : vector<224x128xf32>
    %6 = arith.negf %5 : vector<224x128xf32>
    %7 = math.exp %6 : vector<224x128xf32>
    %cst_5 = arith.constant 1.000000e+00 : f32
    %8 = vector.broadcast %cst_5 : f32 to vector<224x128xf32>
    %9 = arith.addf %8, %7 : vector<224x128xf32>
    %10 = arith.divf %8, %9 : vector<224x128xf32>
    %c0_6 = arith.constant 0 : index
    %c0_7 = arith.constant 0 : index
    %11 = vector.load %arg4[%c0_6, %c0_7] : memref<32x8xf32, #tpu.memory_space<vmem>>, vector<32x8xf32>
    %cst_8 = arith.constant 1.000000e+00 : f32
    %12 = vector.broadcast %cst_8 : f32 to vector<32x128xf32>
    %cst_9 = arith.constant 0.000000e+00 : f32
    %13 = vector.broadcast %cst_9 : f32 to vector<32x128xf32>
    %14 = vector.extract_strided_slice %10 {offsets = [0, 0], sizes = [32, 128], strides = [1, 1]} : vector<224x128xf32> to vector<32x128xf32>
    %15 = arith.mulf %12, %14 : vector<32x128xf32>
    %16 = vector.extract_strided_slice %10 {offsets = [32, 0], sizes = [32, 128], strides = [1, 1]} : vector<224x128xf32> to vector<32x128xf32>
    %17 = arith.mulf %15, %16 : vector<32x128xf32>
    %18 = vector.extract_strided_slice %10 {offsets = [96, 0], sizes = [32, 128], strides = [1, 1]} : vector<224x128xf32> to vector<32x128xf32>
    %19 = arith.mulf %17, %18 : vector<32x128xf32>
    %20 = vector.extract_strided_slice %11 {offsets = [0, 0], sizes = [32, 1], strides = [1, 1]} : vector<32x8xf32> to vector<32x1xf32>
    %21 = vector.broadcast %20 : vector<32x1xf32> to vector<32x128xf32>
    %22 = arith.mulf %19, %21 : vector<32x128xf32>
    %23 = arith.addf %13, %22 : vector<32x128xf32>
    %cst_10 = arith.constant 1.000000e+00 : f32
    %24 = vector.broadcast %cst_10 : f32 to vector<32x128xf32>
    %25 = arith.subf %24, %18 : vector<32x128xf32>
    %26 = arith.mulf %17, %25 : vector<32x128xf32>
    %27 = vector.extract_strided_slice %11 {offsets = [0, 1], sizes = [32, 1], strides = [1, 1]} : vector<32x8xf32> to vector<32x1xf32>
    %28 = vector.broadcast %27 : vector<32x1xf32> to vector<32x128xf32>
    %29 = arith.mulf %26, %28 : vector<32x128xf32>
    %30 = arith.addf %23, %29 : vector<32x128xf32>
    %cst_11 = arith.constant 1.000000e+00 : f32
    %31 = vector.broadcast %cst_11 : f32 to vector<32x128xf32>
    %32 = arith.subf %31, %16 : vector<32x128xf32>
    %33 = arith.mulf %15, %32 : vector<32x128xf32>
    %34 = vector.extract_strided_slice %10 {offsets = [128, 0], sizes = [32, 128], strides = [1, 1]} : vector<224x128xf32> to vector<32x128xf32>
    %35 = arith.mulf %33, %34 : vector<32x128xf32>
    %36 = vector.extract_strided_slice %11 {offsets = [0, 2], sizes = [32, 1], strides = [1, 1]} : vector<32x8xf32> to vector<32x1xf32>
    %37 = vector.broadcast %36 : vector<32x1xf32> to vector<32x128xf32>
    %38 = arith.mulf %35, %37 : vector<32x128xf32>
    %39 = arith.addf %30, %38 : vector<32x128xf32>
    %cst_12 = arith.constant 1.000000e+00 : f32
    %40 = vector.broadcast %cst_12 : f32 to vector<32x128xf32>
    %41 = arith.subf %40, %34 : vector<32x128xf32>
    %42 = arith.mulf %33, %41 : vector<32x128xf32>
    %43 = vector.extract_strided_slice %11 {offsets = [0, 3], sizes = [32, 1], strides = [1, 1]} : vector<32x8xf32> to vector<32x1xf32>
    %44 = vector.broadcast %43 : vector<32x1xf32> to vector<32x128xf32>
    %45 = arith.mulf %42, %44 : vector<32x128xf32>
    %46 = arith.addf %39, %45 : vector<32x128xf32>
    %cst_13 = arith.constant 1.000000e+00 : f32
    %47 = vector.broadcast %cst_13 : f32 to vector<32x128xf32>
    %48 = arith.subf %47, %14 : vector<32x128xf32>
    %49 = arith.mulf %12, %48 : vector<32x128xf32>
    %50 = vector.extract_strided_slice %10 {offsets = [64, 0], sizes = [32, 128], strides = [1, 1]} : vector<224x128xf32> to vector<32x128xf32>
    %51 = arith.mulf %49, %50 : vector<32x128xf32>
    %52 = vector.extract_strided_slice %10 {offsets = [160, 0], sizes = [32, 128], strides = [1, 1]} : vector<224x128xf32> to vector<32x128xf32>
    %53 = arith.mulf %51, %52 : vector<32x128xf32>
    %54 = vector.extract_strided_slice %11 {offsets = [0, 4], sizes = [32, 1], strides = [1, 1]} : vector<32x8xf32> to vector<32x1xf32>
    %55 = vector.broadcast %54 : vector<32x1xf32> to vector<32x128xf32>
    %56 = arith.mulf %53, %55 : vector<32x128xf32>
    %57 = arith.addf %46, %56 : vector<32x128xf32>
    %cst_14 = arith.constant 1.000000e+00 : f32
    %58 = vector.broadcast %cst_14 : f32 to vector<32x128xf32>
    %59 = arith.subf %58, %52 : vector<32x128xf32>
    %60 = arith.mulf %51, %59 : vector<32x128xf32>
    %61 = vector.extract_strided_slice %11 {offsets = [0, 5], sizes = [32, 1], strides = [1, 1]} : vector<32x8xf32> to vector<32x1xf32>
    %62 = vector.broadcast %61 : vector<32x1xf32> to vector<32x128xf32>
    %63 = arith.mulf %60, %62 : vector<32x128xf32>
    %64 = arith.addf %57, %63 : vector<32x128xf32>
    %cst_15 = arith.constant 1.000000e+00 : f32
    %65 = vector.broadcast %cst_15 : f32 to vector<32x128xf32>
    %66 = arith.subf %65, %50 : vector<32x128xf32>
    %67 = arith.mulf %49, %66 : vector<32x128xf32>
    %68 = vector.extract_strided_slice %10 {offsets = [192, 0], sizes = [32, 128], strides = [1, 1]} : vector<224x128xf32> to vector<32x128xf32>
    %69 = arith.mulf %67, %68 : vector<32x128xf32>
    %70 = vector.extract_strided_slice %11 {offsets = [0, 6], sizes = [32, 1], strides = [1, 1]} : vector<32x8xf32> to vector<32x1xf32>
    %71 = vector.broadcast %70 : vector<32x1xf32> to vector<32x128xf32>
    %72 = arith.mulf %69, %71 : vector<32x128xf32>
    %73 = arith.addf %64, %72 : vector<32x128xf32>
    %cst_16 = arith.constant 1.000000e+00 : f32
    %74 = vector.broadcast %cst_16 : f32 to vector<32x128xf32>
    %75 = arith.subf %74, %68 : vector<32x128xf32>
    %76 = arith.mulf %67, %75 : vector<32x128xf32>
    %77 = vector.extract_strided_slice %11 {offsets = [0, 7], sizes = [32, 1], strides = [1, 1]} : vector<32x8xf32> to vector<32x1xf32>
    %78 = vector.broadcast %77 : vector<32x1xf32> to vector<32x128xf32>
    %79 = arith.mulf %76, %78 : vector<32x128xf32>
    %80 = arith.addf %73, %79 : vector<32x128xf32>
    %c0_17 = arith.constant 0 : index
    %c0_18 = arith.constant 0 : index
    %81 = vector.load %arg7[%c0_17, %c0_18] : memref<32x128xf32, #tpu.memory_space<vmem>>, vector<32x128xf32>
    tpu.vector_store %arg7[%c0_17, %c0_18], %80 {strides = array<i32>} : memref<32x128xf32, #tpu.memory_space<vmem>>, vector<32x128xf32>,
    %c0_19 = arith.constant 0 : index
    %c0_20 = arith.constant 0 : index
    %82 = vector.load %arg5[%c0_19, %c0_20] : memref<32x1xf32, #tpu.memory_space<vmem>>, vector<32x1xf32>
    %83 = vector.broadcast %82 : vector<32x1xf32> to vector<32x128xf32>
    %84 = arith.mulf %80, %83 : vector<32x128xf32>
    %cst_21 = arith.constant dense<0.000000e+00> : vector<128xf32>
    %85 = vector.multi_reduction <add>, %84, %cst_21 [0] : vector<32x128xf32> to vector<128xf32>
    %86 = vector.shape_cast %85 : vector<128xf32> to vector<1x128xf32>
    %c0_22 = arith.constant 0 : index
    %c0_23 = arith.constant 0 : index
    %87 = vector.load %arg6[%c0_22, %c0_23] : memref<1x128xf32, #tpu.memory_space<vmem>>, vector<1x128xf32>
    tpu.vector_store %arg6[%c0_22, %c0_23], %86 {strides = array<i32>} : memref<1x128xf32, #tpu.memory_space<vmem>>, vector<1x128xf32>,
    %cst_24 = arith.constant 0.000000e+00 : f32
    %88 = vector.broadcast %cst_24 : f32 to vector<32x128xf32>
    %89 = arith.cmpf ogt, %80, %88 : vector<32x128xf32>
    %cst_25 = arith.constant 0.000000e+00 : f32
    %90 = vector.broadcast %cst_25 : f32 to vector<32x128xf32>
    %91 = arith.cmpf olt, %80, %90 : vector<32x128xf32>
    %cst_26 = arith.constant -1.000000e+00 : f32
    %cst_27 = arith.constant 0.000000e+00 : f32
    %92 = vector.broadcast %cst_26 : f32 to vector<32x128xf32>
    %93 = vector.broadcast %cst_27 : f32 to vector<32x128xf32>
    %94 = arith.select %91, %92, %93 : vector<32x128xi1>, vector<32x128xf32>
    %cst_28 = arith.constant 1.000000e+00 : f32
    %95 = vector.broadcast %cst_28 : f32 to vector<32x128xf32>
    %96 = arith.select %89, %95, %94 : vector<32x128xi1>, vector<32x128xf32>
    %97 = vector.broadcast %82 : vector<32x1xf32> to vector<32x128xf32>
    %98 = arith.mulf %96, %97 : vector<32x128xf32>
    %cst_29 = arith.constant dense<0.000000e+00> : vector<128xf32>
    %99 = vector.multi_reduction <add>, %98, %cst_29 [0] : vector<32x128xf32> to vector<128xf32>
    %100 = vector.shape_cast %99 : vector<128xf32> to vector<1x128xf32>
    %cst_30 = arith.constant 0.000000e+00 : f32
    %101 = vector.broadcast %cst_30 : f32 to vector<1x128xf32>
    %102 = arith.cmpf ogt, %100, %101 : vector<1x128xf32>
    %cst_31 = arith.constant 0.000000e+00 : f32
    %103 = vector.broadcast %cst_31 : f32 to vector<1x128xf32>
    %104 = arith.cmpf olt, %100, %103 : vector<1x128xf32>
    %cst_32 = arith.constant -1.000000e+00 : f32
    %cst_33 = arith.constant 0.000000e+00 : f32
    %105 = vector.broadcast %cst_32 : f32 to vector<1x128xf32>
    %106 = vector.broadcast %cst_33 : f32 to vector<1x128xf32>
    %107 = arith.select %104, %105, %106 : vector<1x128xi1>, vector<1x128xf32>
    %cst_34 = arith.constant 1.000000e+00 : f32
    %108 = vector.broadcast %cst_34 : f32 to vector<1x128xf32>
    %109 = arith.select %102, %108, %107 : vector<1x128xi1>, vector<1x128xf32>
    %110 = arith.fptosi %109 : vector<1x128xf32> to vector<1x128xi32>
    %c0_35 = arith.constant 0 : index
    %c0_36 = arith.constant 0 : index
    %111 = vector.load %arg8[%c0_35, %c0_36] : memref<1x128xi32, #tpu.memory_space<vmem>>, vector<1x128xi32>
    tpu.vector_store %arg8[%c0_35, %c0_36], %110 {strides = array<i32>} : memref<1x128xi32, #tpu.memory_space<vmem>>, vector<1x128xi32>,
    return
  }
  func.func @transform_0(%arg0: i32) -> (i32, i32) {
    %c0_i32 = arith.constant 0 : i32
    %c0_i32_0 = arith.constant 0 : i32
    return %c0_i32, %arg0 : i32, i32
  }
  func.func @transform_1(%arg0: i32) -> (i32, i32) {
    %c0_i32 = arith.constant 0 : i32
    %c0_i32_0 = arith.constant 0 : i32
    %c0_i32_1 = arith.constant 0 : i32
    return %c0_i32, %c0_i32_0 : i32, i32
  }
  func.func @transform_2(%arg0: i32) -> (i32, i32) {
    %c0_i32 = arith.constant 0 : i32
    %c0_i32_0 = arith.constant 0 : i32
    %c0_i32_1 = arith.constant 0 : i32
    return %c0_i32, %c0_i32_0 : i32, i32
  }
  func.func @transform_3(%arg0: i32) -> (i32, i32) {
    %c0_i32 = arith.constant 0 : i32
    %c0_i32_0 = arith.constant 0 : i32
    %c0_i32_1 = arith.constant 0 : i32
    return %c0_i32, %c0_i32_0 : i32, i32
  }
  func.func @transform_4(%arg0: i32) -> (i32, i32) {
    %c0_i32 = arith.constant 0 : i32
    %c0_i32_0 = arith.constant 0 : i32
    %c0_i32_1 = arith.constant 0 : i32
    return %c0_i32, %c0_i32_0 : i32, i32
  }
  func.func @transform_5(%arg0: i32) -> (i32, i32) {
    %c0_i32 = arith.constant 0 : i32
    %c0_i32_0 = arith.constant 0 : i32
    return %c0_i32, %arg0 : i32, i32
  }
  func.func @transform_6(%arg0: i32) -> (i32, i32) {
    %c0_i32 = arith.constant 0 : i32
    %c0_i32_0 = arith.constant 0 : i32
    return %c0_i32, %arg0 : i32, i32
  }
  func.func @transform_7(%arg0: i32) -> (i32, i32) {
    %c0_i32 = arith.constant 0 : i32
    %c0_i32_0 = arith.constant 0 : i32
    return %c0_i32, %arg0 : i32, i32
  }
}

</mosaic_0001>

<llo_original>
// kernel: tpu_custom_call.1
$region0: #{tpu_custom_call.1}
  #allocation0 [shape = 'u32[]', space=smem, size = 0x4, offset = 0x4, fixed_abs, tag = 'smem constant byte address 0x4 - core index']
  #allocation1 [shape = 'u32[144,128]{1,0:T(1,128)}', space=vmem, size = 0x12000, scoped, tag = 'internal scratch']
  %s0 = inlined_call_operand.vmem [shape: f32[16,256], index: 0, kind: input, shape index: {}]
  %s1 = inlined_call_operand.vmem [shape: f32[224,16], index: 1, kind: input, shape index: {}]
  %s2 = inlined_call_operand.vmem [shape: f32[224,1], index: 2, kind: input, shape index: {}]
  %s3 = inlined_call_operand.vmem [shape: f32[32,8], index: 3, kind: input, shape index: {}]
  %s4 = inlined_call_operand.vmem [shape: f32[32,1], index: 4, kind: input, shape index: {}]
  %s5 = inlined_call_operand.hbm [shape: f32[1,256], index: 5, kind: output, shape index: {0}]
  %s6 = inlined_call_operand.hbm [shape: f32[32,256], index: 6, kind: output, shape index: {1}]
  %s7 = inlined_call_operand.hbm [shape: s32[1,256], index: 7, kind: output, shape index: {2}]
  %8 = xla_tuple %s5, %s6, %s7
  %s9 = sld [smem:[#allocation0]]
  $region107: #{tpu_custom_call.1} parent=0
    _
  %s11 = ssub.s32 1, %s9
  %s12 = scalar_select 0, %s11, %s9
  $region1: #{tpu_custom_call.1} parent=0
    #allocation2 [shape = 'u8[16384]{0}', space=vmem, size = 0x4000, scoped, tag = 'input window, operand 0']
    #allocation3 [shape = 'u8[1024]{0}', space=vmem, size = 0x400, scoped, tag = 'output window, operand 0']
    #allocation4 [shape = 's32[2]{0}', space=sflag, size = 0x8, scoped, tag = 'scoped memory for tpu_custom_call.1']
    #allocation5 [shape = 'u8[32768]{0}', space=vmem, size = 0x8000, scoped, tag = 'output window, operand 1']
    #allocation6 [shape = 's32[2]{0}', space=sflag, size = 0x8, scoped, tag = 'scoped memory for tpu_custom_call.1']
    #allocation7 [shape = 'u8[1024]{0}', space=vmem, size = 0x400, scoped, tag = 'output window, operand 2']
    %13 = vsyncpa [#allocation4], 0
    %s14 = scalar_lea.sflag [#allocation4], 1
    %15 = vsyncpa %s14, 0
    %16 = vsyncpa [#allocation6], 0
    %s17 = scalar_lea.sflag [#allocation6], 1
    %18 = vsyncpa %s17, 0
    loop: start=0, step=1, limit=4
    $region2: #{tpu_custom_call.1} parent=1 // loop_pre_header
      _
    $region3: #{tpu_custom_call.1} parent=1 // loop_header
      %s20 = sphi 0, %s24
      %p21 = scmp.ge.s32.totalorder %s20, 4
      %s30 = sphi 0, %s32
      %s33 = sphi 0, %s30
      %s34 = sphi 0, %s33
      %s50 = sphi 0, %s34
      %s54 = sphi 0, %s54
      %s56 = sphi 0, %s54
      %s57 = sphi 0, %s56
      %s71 = sphi 0, %s57
      %s75 = sphi 0, %s75
      %s77 = sphi 0, %s75
      %s78 = sphi 0, %s77
      %s92 = sphi 0, %s78
      %s96 = sphi 0, %s96
      %s98 = sphi 0, %s96
      %s99 = sphi 0, %s98
      %s113 = sphi 0, %s99
      %s117 = sphi 0, %s117
      %s119 = sphi 0, %s117
      %s120 = sphi 0, %s119
      %s134 = sphi 0, %s120
      %s140 = sphi 0, %s142
      %s143 = sphi 0, %s140
      %s144 = sphi 0, %s143
      %s160 = sphi 0, %s144
      %s166 = sphi 0, %s168
      %s169 = sphi 0, %s166
      %s170 = sphi 0, %s169
      %s186 = sphi 0, %s170
      %s192 = sphi 0, %s194
      %s195 = sphi 0, %s192
      %s196 = sphi 0, %s195
      %s212 = sphi 0, %s196
    $region4: #{tpu_custom_call.1} parent=1 // loop_header_branch
      %23 = sbr.rel (%p21) target = $region8
    $region5: #{tpu_custom_call.1} parent=1 // loop_body
      %s25 = ssub.s32 %s20, 1
      %s26 = ssub.s32 %s20, 2
      %s27 = sadd.s32 %s20, 1
      %s28 = ssub.s32 %s20, %s27
      %p29 = scmp.eq.s32.totalorder %s28, 0
      %s31 = sadd.s32 %s30, 1
      %s32 = scalar_select %p29, %s30, %s31
      %p35 = pneg %p29
      %p36 = scmp.eq.s32.totalorder %s20, 1
      %p37 = por %p35, %p36
      %p38 = scmp.ne.s32.totalorder %s30, %s33
      %p39 = scmp.eq.s32.totalorder %s20, 0
      %p40 = por %p38, %p39
      %p41 = scmp.ne.s32.totalorder %s30, %s33
      %p42 = scmp.eq.s32.totalorder %s25, 1
      %p43 = por %p41, %p42
      %p44 = scmp.ne.s32.totalorder %s33, %s34
      %p45 = scmp.eq.s32.totalorder %s25, 0
      %p46 = por %p44, %p45
      %p47 = scmp.ne.s32.totalorder %s33, %s34
      %p48 = scmp.eq.s32.totalorder %s26, 1
      %p49 = por %p47, %p48
      %p51 = scmp.ne.s32.totalorder %s34, %s50
      %p52 = scmp.eq.s32.totalorder %s26, 0
      %p53 = por %p51, %p52
      %s55 = sadd.s32 %s54, 1
      %p58 = scmp.eq.s32.totalorder %s20, 1
      %p59 = scmp.ne.s32.totalorder %s54, %s56
      %p60 = scmp.eq.s32.totalorder %s20, 0
      %p61 = por %p59, %p60
      %p62 = scmp.ne.s32.totalorder %s54, %s56
      %p63 = scmp.eq.s32.totalorder %s25, 1
      %p64 = por %p62, %p63
      %p65 = scmp.ne.s32.totalorder %s56, %s57
      %p66 = scmp.eq.s32.totalorder %s25, 0
      %p67 = por %p65, %p66
      %p68 = scmp.ne.s32.totalorder %s56, %s57
      %p69 = scmp.eq.s32.totalorder %s26, 1
      %p70 = por %p68, %p69
      %p72 = scmp.ne.s32.totalorder %s57, %s71
      %p73 = scmp.eq.s32.totalorder %s26, 0
      %p74 = por %p72, %p73
      %s76 = sadd.s32 %s75, 1
      %p79 = scmp.eq.s32.totalorder %s20, 1
      %p80 = scmp.ne.s32.totalorder %s75, %s77
      %p81 = scmp.eq.s32.totalorder %s20, 0
      %p82 = por %p80, %p81
      %p83 = scmp.ne.s32.totalorder %s75, %s77
      %p84 = scmp.eq.s32.totalorder %s25, 1
      %p85 = por %p83, %p84
      %p86 = scmp.ne.s32.totalorder %s77, %s78
      %p87 = scmp.eq.s32.totalorder %s25, 0
      %p88 = por %p86, %p87
      %p89 = scmp.ne.s32.totalorder %s77, %s78
      %p90 = scmp.eq.s32.totalorder %s26, 1
      %p91 = por %p89, %p90
      %p93 = scmp.ne.s32.totalorder %s78, %s92
      %p94 = scmp.eq.s32.totalorder %s26, 0
      %p95 = por %p93, %p94
      %s97 = sadd.s32 %s96, 1
      %p100 = scmp.eq.s32.totalorder %s20, 1
      %p101 = scmp.ne.s32.totalorder %s96, %s98
      %p102 = scmp.eq.s32.totalorder %s20, 0
      %p103 = por %p101, %p102
      %p104 = scmp.ne.s32.totalorder %s96, %s98
      %p105 = scmp.eq.s32.totalorder %s25, 1
      %p106 = por %p104, %p105
      %p107 = scmp.ne.s32.totalorder %s98, %s99
      %p108 = scmp.eq.s32.totalorder %s25, 0
      %p109 = por %p107, %p108
      %p110 = scmp.ne.s32.totalorder %s98, %s99
      %p111 = scmp.eq.s32.totalorder %s26, 1
      %p112 = por %p110, %p111
      %p114 = scmp.ne.s32.totalorder %s99, %s113
      %p115 = scmp.eq.s32.totalorder %s26, 0
      %p116 = por %p114, %p115
      %s118 = sadd.s32 %s117, 1
      %p121 = scmp.eq.s32.totalorder %s20, 1
      %p122 = scmp.ne.s32.totalorder %s117, %s119
      %p123 = scmp.eq.s32.totalorder %s20, 0
      %p124 = por %p122, %p123
      %p125 = scmp.ne.s32.totalorder %s117, %s119
      %p126 = scmp.eq.s32.totalorder %s25, 1
      %p127 = por %p125, %p126
      %p128 = scmp.ne.s32.totalorder %s119, %s120
      %p129 = scmp.eq.s32.totalorder %s25, 0
      %p130 = por %p128, %p129
      %p131 = scmp.ne.s32.totalorder %s119, %s120
      %p132 = scmp.eq.s32.totalorder %s26, 1
      %p133 = por %p131, %p132
      %p135 = scmp.ne.s32.totalorder %s120, %s134
      %p136 = scmp.eq.s32.totalorder %s26, 0
      %p137 = por %p135, %p136
      %s138 = ssub.s32 %s20, %s27
      %p139 = scmp.eq.s32.totalorder %s138, 0
      %s141 = sadd.s32 %s140, 1
      %s142 = scalar_select %p139, %s140, %s141
      %p145 = pneg %p139
      %p146 = scmp.eq.s32.totalorder %s20, 1
      %p147 = por %p145, %p146
      %p148 = scmp.ne.s32.totalorder %s140, %s143
      %p149 = scmp.eq.s32.totalorder %s20, 0
      %p150 = por %p148, %p149
      %p151 = scmp.ne.s32.totalorder %s140, %s143
      %p152 = scmp.eq.s32.totalorder %s25, 1
      %p153 = por %p151, %p152
      %p154 = scmp.ne.s32.totalorder %s143, %s144
      %p155 = scmp.eq.s32.totalorder %s25, 0
      %p156 = por %p154, %p155
      %p157 = scmp.ne.s32.totalorder %s143, %s144
      %p158 = scmp.eq.s32.totalorder %s26, 1
      %p159 = por %p157, %p158
      %p161 = scmp.ne.s32.totalorder %s144, %s160
      %p162 = scmp.eq.s32.totalorder %s26, 0
      %p163 = por %p161, %p162
      %s164 = ssub.s32 %s20, %s27
      %p165 = scmp.eq.s32.totalorder %s164, 0
      %s167 = sadd.s32 %s166, 1
      %s168 = scalar_select %p165, %s166, %s167
      %p171 = pneg %p165
      %p172 = scmp.eq.s32.totalorder %s20, 1
      %p173 = por %p171, %p172
      %p174 = scmp.ne.s32.totalorder %s166, %s169
      %p175 = scmp.eq.s32.totalorder %s20, 0
      %p176 = por %p174, %p175
      %p177 = scmp.ne.s32.totalorder %s166, %s169
      %p178 = scmp.eq.s32.totalorder %s25, 1
      %p179 = por %p177, %p178
      %p180 = scmp.ne.s32.totalorder %s169, %s170
      %p181 = scmp.eq.s32.totalorder %s25, 0
      %p182 = por %p180, %p181
      %p183 = scmp.ne.s32.totalorder %s169, %s170
      %p184 = scmp.eq.s32.totalorder %s26, 1
      %p185 = por %p183, %p184
      %p187 = scmp.ne.s32.totalorder %s170, %s186
      %p188 = scmp.eq.s32.totalorder %s26, 0
      %p189 = por %p187, %p188
      %s190 = ssub.s32 %s20, %s27
      %p191 = scmp.eq.s32.totalorder %s190, 0
      %s193 = sadd.s32 %s192, 1
      %s194 = scalar_select %p191, %s192, %s193
      %p197 = pneg %p191
      %p198 = scmp.eq.s32.totalorder %s20, 1
      %p199 = por %p197, %p198
      %p200 = scmp.ne.s32.totalorder %s192, %s195
      %p201 = scmp.eq.s32.totalorder %s20, 0
      %p202 = por %p200, %p201
      %p203 = scmp.ne.s32.totalorder %s192, %s195
      %p204 = scmp.eq.s32.totalorder %s25, 1
      %p205 = por %p203, %p204
      %p206 = scmp.ne.s32.totalorder %s195, %s196
      %p207 = scmp.eq.s32.totalorder %s25, 0
      %p208 = por %p206, %p207
      %p209 = scmp.ne.s32.totalorder %s195, %s196
      %p210 = scmp.eq.s32.totalorder %s26, 1
      %p211 = por %p209, %p210
      %p213 = scmp.ne.s32.totalorder %s196, %s212
      %p214 = scmp.eq.s32.totalorder %s26, 0
      %p215 = por %p213, %p214
      %p216 = scmp.le.s32.totalorder 1, %s20
      %p217 = scmp.lt.s32.totalorder %s20, 3
      %p218 = pnand %p216, %p217
      %p219 = pneg %p218
      // Predicated region
      $region9: #{tpu_custom_call.1} parent=5 // pred_check
        _
      $region10: #{tpu_custom_call.1} parent=5 // pred_check_branch
        %221 = sbr.rel (%p218) target = $region12
      $region11: #{tpu_custom_call.1} parent=5 // pred_region
        %s222 = ssub.s32 %s20, 1
        // Predicated region
        $region13: #{tpu_custom_call.1} parent=11 // pred_check
          %p223 = pneg %p67
        $region14: #{tpu_custom_call.1} parent=11 // pred_check_branch
          %225 = sbr.rel (%p223) target = $region16
        $region15: #{tpu_custom_call.1} parent=11 // pred_region
          _
        $region16: #{tpu_custom_call.1} parent=11 // pred_fallthru
          _
        // Predicated region
        $region17: #{tpu_custom_call.1} parent=11 // pred_check
          %p226 = pneg %p88
        $region18: #{tpu_custom_call.1} parent=11 // pred_check_branch
          %228 = sbr.rel (%p226) target = $region20
        $region19: #{tpu_custom_call.1} parent=11 // pred_region
          _
        $region20: #{tpu_custom_call.1} parent=11 // pred_fallthru
          _
        // Predicated region
        $region21: #{tpu_custom_call.1} parent=11 // pred_check
          %p229 = pneg %p109
        $region22: #{tpu_custom_call.1} parent=11 // pred_check_branch
          %231 = sbr.rel (%p229) target = $region24
        $region23: #{tpu_custom_call.1} parent=11 // pred_region
          _
        $region24: #{tpu_custom_call.1} parent=11 // pred_fallthru
          _
        // Predicated region
        $region25: #{tpu_custom_call.1} parent=11 // pred_check
          %p232 = pneg %p130
        $region26: #{tpu_custom_call.1} parent=11 // pred_check_branch
          %234 = sbr.rel (%p232) target = $region28
        $region27: #{tpu_custom_call.1} parent=11 // pred_region
          _
        $region28: #{tpu_custom_call.1} parent=11 // pred_fallthru
          _
      $region12: #{tpu_custom_call.1} parent=5 // pred_fallthru
        _
      %p235 = scmp.lt.s32.totalorder %s20, 2
      // Predicated region
      $region29: #{tpu_custom_call.1} parent=5 // pred_check
        %p236 = pneg %p235
      $region30: #{tpu_custom_call.1} parent=5 // pred_check_branch
        %238 = sbr.rel (%p236) target = $region32
      $region31: #{tpu_custom_call.1} parent=5 // pred_region
        // Predicated region
        $region33: #{tpu_custom_call.1} parent=31 // pred_check
          %p239 = pneg %p40
        $region34: #{tpu_custom_call.1} parent=31 // pred_check_branch
          %241 = sbr.rel (%p239) target = $region36
        $region35: #{tpu_custom_call.1} parent=31 // pred_region
          %s242 = sand.u32 %s30, 1
          %s243 = sand.u32 %s30, 1
          %s244 = smul.addr %s243, 16
          %s245 = scalar_lea.vmem [#allocation2], %s244
          %s246 = smul.addr %s20, 8
          %s247 = scalar_lea.vmem %s0, %s246
          // Predicated region
          $region37: #{tpu_custom_call.1} parent=35 // pred_check
            _
          $region38: #{tpu_custom_call.1} parent=35 // pred_check_branch
            %249 = sbr.rel (0) target = $region40
          $region39: #{tpu_custom_call.1} parent=35 // pred_region
            // Predicated region
            $region41: #{tpu_custom_call.1} parent=39 // pred_check
              _
            $region42: #{tpu_custom_call.1} parent=39 // pred_check_branch
              %251 = sbr.rel (0) target = $region44
            $region43: #{tpu_custom_call.1} parent=39 // pred_region
              // Predicated region
              $region56: #{tpu_custom_call.1} parent=43 // pred_check
                _
              $region57: #{tpu_custom_call.1} parent=43 // pred_check_branch
                %268 = sbr.rel (0) target = $region59
              $region58: #{tpu_custom_call.1} parent=43 // pred_region
                loop: start=0, step=1, limit=1
                $region60: #{tpu_custom_call.1} parent=58 // loop_pre_header
                  _
                $region61: #{tpu_custom_call.1} parent=58 // loop_header
                  %s270 = sphi 0, %s274
                  %p271 = scmp.ge.s32.totalorder %s270, 1
                  %s275 = sphi %s247, %s247
                  %s276 = sphi %s245, %s245
                $region62: #{tpu_custom_call.1} parent=58 // loop_header_branch
                  %273 = sbr.rel (%p271) target = $region66
                $region63: #{tpu_custom_call.1} parent=58 // loop_body
                  %v277 = vld [vmem:[%s275] sm:$0xff]
                  %278 = vst [vmem:[%s276] sm:$0xff] %v277
                  %v279 = vld [vmem:[%s275 + $0x10] sm:$0xff]
                  %280 = vst [vmem:[%s276 + $0x8] sm:$0xff] %v279
                $region64: #{tpu_custom_call.1} parent=58 // loop_footer
                  %s274 = sadd.s32 1, %s270
                $region65: #{tpu_custom_call.1} parent=58 // loop_footer_branch
                  %269 = sbr.rel target = $region61
                $region66: #{tpu_custom_call.1} parent=58 // loop_exit
                  _
              $region59: #{tpu_custom_call.1} parent=43 // pred_fallthru
                _
              // Predicated region
              $region67: #{tpu_custom_call.1} parent=43 // pred_check
                _
              $region68: #{tpu_custom_call.1} parent=43 // pred_check_branch
                %282 = sbr.rel target = $region70
              $region69: #{tpu_custom_call.1} parent=43 // pred_region
                _
              $region70: #{tpu_custom_call.1} parent=43 // pred_fallthru
                _
            $region44: #{tpu_custom_call.1} parent=39 // pred_fallthru
              _
            // Predicated region
            $region45: #{tpu_custom_call.1} parent=39 // pred_check
              _
            $region46: #{tpu_custom_call.1} parent=39 // pred_check_branch
              %253 = sbr.rel target = $region48
            $region47: #{tpu_custom_call.1} parent=39 // pred_region
              loop: start=0, step=1, limit=1
              $region49: #{tpu_custom_call.1} parent=47 // loop_pre_header
                _
              $region50: #{tpu_custom_call.1} parent=47 // loop_header
                %s256 = sphi 0, %s260
                %p257 = scmp.ge.s32.totalorder %s256, 1
                %s261 = sphi %s247, %s247
                %s262 = sphi %s245, %s245
              $region51: #{tpu_custom_call.1} parent=47 // loop_header_branch
                %259 = sbr.rel (%p257) target = $region55
              $region52: #{tpu_custom_call.1} parent=47 // loop_body
                %v263 = vld [vmem:[%s261] sm:$0xff]
                %264 = vst [vmem:[%s262] sm:$0xff] %v263
                %v265 = vld [vmem:[%s261 + $0x10] sm:$0xff]
                %266 = vst [vmem:[%s262 + $0x8] sm:$0xff] %v265
              $region53: #{tpu_custom_call.1} parent=47 // loop_footer
                %s260 = sadd.s32 1, %s256
              $region54: #{tpu_custom_call.1} parent=47 // loop_footer_branch
                %255 = sbr.rel target = $region50
              $region55: #{tpu_custom_call.1} parent=47 // loop_exit
                _
            $region48: #{tpu_custom_call.1} parent=39 // pred_fallthru
              _
          $region40: #{tpu_custom_call.1} parent=35 // pred_fallthru
            _
          %283 = vnop
        $region36: #{tpu_custom_call.1} parent=31 // pred_fallthru
          _
      $region32: #{tpu_custom_call.1} parent=5 // pred_fallthru
        _
      %p284 = scmp.le.s32.totalorder 1, %s20
      %p285 = scmp.lt.s32.totalorder %s20, 3
      %p286 = pnand %p284, %p285
      %p287 = pneg %p286
      // Predicated region
      $region71: #{tpu_custom_call.1} parent=5 // pred_check
        _
      $region72: #{tpu_custom_call.1} parent=5 // pred_check_branch
        %289 = sbr.rel (%p286) target = $region74
      $region73: #{tpu_custom_call.1} parent=5 // pred_region
        %s290 = ssub.s32 %s20, 1
        %s291 = sand.u32 %s33, 1
        %s292 = sand.u32 %s33, 1
        %s293 = smul.addr %s292, 16
        %s294 = scalar_lea.vmem [#allocation2], %s293
        // Predicated region
        $region75: #{tpu_custom_call.1} parent=73 // pred_check
          %p295 = pneg %p46
        $region76: #{tpu_custom_call.1} parent=73 // pred_check_branch
          %297 = sbr.rel (%p295) target = $region78
        $region77: #{tpu_custom_call.1} parent=73 // pred_region
          _
        $region78: #{tpu_custom_call.1} parent=73 // pred_fallthru
          _
        %s298 = sand.u32 %s33, 1
        %s299 = sand.u32 %s33, 1
        %s300 = smul.addr %s299, 16
        %s301 = scalar_lea.vmem [#allocation2], %s300
        %p302 = pneg %p46
        %p303 = pneg %p43
        %p304 = pneg %p67
        %p305 = pneg %p64
        %p306 = pneg %p88
        %p307 = pneg %p85
        %p308 = pneg %p109
        %p309 = pneg %p106
        %p310 = pneg %p130
        %p311 = pneg %p127
        %p312 = pneg %p156
        %p313 = pneg %p153
        %s314 = sand.u32 %s143, 1
        %s315 = scalar_lea.sflag [#allocation4], %s314
        %s316 = sand.u32 %s143, 1
        %s317 = scalar_lea.vmem [#allocation3], %s316
        %p318 = pneg %p182
        %p319 = pneg %p179
        %s320 = sand.u32 %s25, 1
        %s321 = scalar_lea.sflag [#allocation6], %s320
        %s322 = sand.u32 %s169, 1
        %s323 = smul.addr %s322, 32
        %s324 = scalar_lea.vmem [#allocation5], %s323
        %p325 = pneg %p208
        %p326 = pneg %p205
        %s327 = sand.u32 %s25, 1
        %s328 = scalar_lea.sflag [#allocation6], %s327
        %s329 = sand.u32 %s195, 1
        %s330 = scalar_lea.vmem [#allocation7], %s329
        %v331 = vld [vmem:[%s294] sm:$0xff]
        %v332 = vld [vmem:[%s294 + $0x8] sm:$0xff]
        %v333 = vld [vmem:[%s1] sm:$0xff]
        %v334 = vld [vmem:[%s1 + $0x8] sm:$0xff]
        %v335 = vld [vmem:[%s1 + $0x10] sm:$0xff]
        %v336 = vld [vmem:[%s1 + $0x18] sm:$0xff]
        %v337 = vld [vmem:[%s1 + $0x20] sm:$0xff]
        %v338 = vld [vmem:[%s1 + $0x28] sm:$0xff]
        %v339 = vld [vmem:[%s1 + $0x30] sm:$0xff]
        %v340 = vld [vmem:[%s1 + $0x38] sm:$0xff]
        %v341 = vld [vmem:[%s1 + $0x40] sm:$0xff]
        %v342 = vld [vmem:[%s1 + $0x48] sm:$0xff]
        %v343 = vld [vmem:[%s1 + $0x50] sm:$0xff]
        %v344 = vld [vmem:[%s1 + $0x58] sm:$0xff]
        %v345 = vld [vmem:[%s1 + $0x60] sm:$0xff]
        %v346 = vld [vmem:[%s1 + $0x68] sm:$0xff]
        %v347 = vld [vmem:[%s1 + $0x70] sm:$0xff]
        %v348 = vld [vmem:[%s1 + $0x78] sm:$0xff]
        %v349 = vld [vmem:[%s1 + $0x80] sm:$0xff]
        %v350 = vld [vmem:[%s1 + $0x88] sm:$0xff]
        %v351 = vld [vmem:[%s1 + $0x90] sm:$0xff]
        %v352 = vld [vmem:[%s1 + $0x98] sm:$0xff]
        %v353 = vld [vmem:[%s1 + $0xa0] sm:$0xff]
        %v354 = vld [vmem:[%s1 + $0xa8] sm:$0xff]
        %v355 = vld [vmem:[%s1 + $0xb0] sm:$0xff]
        %v356 = vld [vmem:[%s1 + $0xb8] sm:$0xff]
        %v357 = vld [vmem:[%s1 + $0xc0] sm:$0xff]
        %v358 = vld [vmem:[%s1 + $0xc8] sm:$0xff]
        %v359 = vld [vmem:[%s1 + $0xd0] sm:$0xff]
        %v360 = vld [vmem:[%s1 + $0xd8] sm:$0xff]
        %v361 = vld [vmem:[%s2] sm:$0xff]
        %v362 = vld [vmem:[%s2 + $0x8] sm:$0xff]
        %v363 = vld [vmem:[%s2 + $0x10] sm:$0xff]
        %v364 = vld [vmem:[%s2 + $0x18] sm:$0xff]
        %v365 = vld [vmem:[%s2 + $0x20] sm:$0xff]
        %v366 = vld [vmem:[%s2 + $0x28] sm:$0xff]
        %v367 = vld [vmem:[%s2 + $0x30] sm:$0xff]
        %v368 = vld [vmem:[%s2 + $0x38] sm:$0xff]
        %v369 = vld [vmem:[%s2 + $0x40] sm:$0xff]
        %v370 = vld [vmem:[%s2 + $0x48] sm:$0xff]
        %v371 = vld [vmem:[%s2 + $0x50] sm:$0xff]
        %v372 = vld [vmem:[%s2 + $0x58] sm:$0xff]
        %v373 = vld [vmem:[%s2 + $0x60] sm:$0xff]
        %v374 = vld [vmem:[%s2 + $0x68] sm:$0xff]
        %v375 = vld [vmem:[%s2 + $0x70] sm:$0xff]
        %v376 = vld [vmem:[%s2 + $0x78] sm:$0xff]
        %v377 = vld [vmem:[%s2 + $0x80] sm:$0xff]
        %v378 = vld [vmem:[%s2 + $0x88] sm:$0xff]
        %v379 = vld [vmem:[%s2 + $0x90] sm:$0xff]
        %v380 = vld [vmem:[%s2 + $0x98] sm:$0xff]
        %v381 = vld [vmem:[%s2 + $0xa0] sm:$0xff]
        %v382 = vld [vmem:[%s2 + $0xa8] sm:$0xff]
        %v383 = vld [vmem:[%s2 + $0xb0] sm:$0xff]
        %v384 = vld [vmem:[%s2 + $0xb8] sm:$0xff]
        %v385 = vld [vmem:[%s2 + $0xc0] sm:$0xff]
        %v386 = vld [vmem:[%s2 + $0xc8] sm:$0xff]
        %v387 = vld [vmem:[%s2 + $0xd0] sm:$0xff]
        %v388 = vld [vmem:[%s2 + $0xd8] sm:$0xff]
        %390 = vset.pattern.permute.xlu0 0
        %391 = vperm.xlu0 %390, %v361
        %v392 = vpop.permute.xlu0 %391
        %395 = vset.pattern.permute.xlu0 0
        %396 = vperm.xlu0 %395, %v362
        %v397 = vpop.permute.xlu0 %396
        %400 = vset.pattern.permute.xlu0 0
        %401 = vperm.xlu0 %400, %v363
        %v402 = vpop.permute.xlu0 %401
        %405 = vset.pattern.permute.xlu0 0
        %406 = vperm.xlu0 %405, %v364
        %v407 = vpop.permute.xlu0 %406
        %410 = vset.pattern.permute.xlu0 0
        %411 = vperm.xlu0 %410, %v365
        %v412 = vpop.permute.xlu0 %411
        %415 = vset.pattern.permute.xlu0 0
        %416 = vperm.xlu0 %415, %v366
        %v417 = vpop.permute.xlu0 %416
        %420 = vset.pattern.permute.xlu0 0
        %421 = vperm.xlu0 %420, %v367
        %v422 = vpop.permute.xlu0 %421
        %425 = vset.pattern.permute.xlu0 0
        %426 = vperm.xlu0 %425, %v368
        %v427 = vpop.permute.xlu0 %426
        %430 = vset.pattern.permute.xlu0 0
        %431 = vperm.xlu0 %430, %v369
        %v432 = vpop.permute.xlu0 %431
        %435 = vset.pattern.permute.xlu0 0
        %436 = vperm.xlu0 %435, %v370
        %v437 = vpop.permute.xlu0 %436
        %440 = vset.pattern.permute.xlu0 0
        %441 = vperm.xlu0 %440, %v371
        %v442 = vpop.permute.xlu0 %441
        %445 = vset.pattern.permute.xlu0 0
        %446 = vperm.xlu0 %445, %v372
        %v447 = vpop.permute.xlu0 %446
        %450 = vset.pattern.permute.xlu0 0
        %451 = vperm.xlu0 %450, %v373
        %v452 = vpop.permute.xlu0 %451
        %455 = vset.pattern.permute.xlu0 0
        %456 = vperm.xlu0 %455, %v374
        %v457 = vpop.permute.xlu0 %456
        %460 = vset.pattern.permute.xlu0 0
        %461 = vperm.xlu0 %460, %v375
        %v462 = vpop.permute.xlu0 %461
        %465 = vset.pattern.permute.xlu0 0
        %466 = vperm.xlu0 %465, %v376
        %v467 = vpop.permute.xlu0 %466
        %470 = vset.pattern.permute.xlu0 0
        %471 = vperm.xlu0 %470, %v377
        %v472 = vpop.permute.xlu0 %471
        %475 = vset.pattern.permute.xlu0 0
        %476 = vperm.xlu0 %475, %v378
        %v477 = vpop.permute.xlu0 %476
        %480 = vset.pattern.permute.xlu0 0
        %481 = vperm.xlu0 %480, %v379
        %v482 = vpop.permute.xlu0 %481
        %485 = vset.pattern.permute.xlu0 0
        %486 = vperm.xlu0 %485, %v380
        %v487 = vpop.permute.xlu0 %486
        %490 = vset.pattern.permute.xlu0 0
        %491 = vperm.xlu0 %490, %v381
        %v492 = vpop.permute.xlu0 %491
        %495 = vset.pattern.permute.xlu0 0
        %496 = vperm.xlu0 %495, %v382
        %v497 = vpop.permute.xlu0 %496
        %500 = vset.pattern.permute.xlu0 0
        %501 = vperm.xlu0 %500, %v383
        %v502 = vpop.permute.xlu0 %501
        %505 = vset.pattern.permute.xlu0 0
        %506 = vperm.xlu0 %505, %v384
        %v507 = vpop.permute.xlu0 %506
        %510 = vset.pattern.permute.xlu0 0
        %511 = vperm.xlu0 %510, %v385
        %v512 = vpop.permute.xlu0 %511
        %515 = vset.pattern.permute.xlu0 0
        %516 = vperm.xlu0 %515, %v386
        %v517 = vpop.permute.xlu0 %516
        %520 = vset.pattern.permute.xlu0 0
        %521 = vperm.xlu0 %520, %v387
        %v522 = vpop.permute.xlu0 %521
        %525 = vset.pattern.permute.xlu0 0
        %526 = vperm.xlu0 %525, %v388
        %v527 = vpop.permute.xlu0 %526
        %vm529 = vcmask 130048
        %v531 = vsel %vm529, %v333, 0
        %v534 = vsel %vm529, %v334, 0
        %v537 = vsel %vm529, %v335, 0
        %v540 = vsel %vm529, %v336, 0
        %v543 = vsel %vm529, %v337, 0
        %v546 = vsel %vm529, %v338, 0
        %v549 = vsel %vm529, %v339, 0
        %v552 = vsel %vm529, %v340, 0
        %v555 = vsel %vm529, %v341, 0
        %v558 = vsel %vm529, %v342, 0
        %v561 = vsel %vm529, %v343, 0
        %v564 = vsel %vm529, %v344, 0
        %v567 = vsel %vm529, %v345, 0
        %v570 = vsel %vm529, %v346, 0
        %v573 = vsel %vm529, %v347, 0
        %v576 = vsel %vm529, %v348, 0
        %v579 = vsel %vm529, %v349, 0
        %v582 = vsel %vm529, %v350, 0
        %v585 = vsel %vm529, %v351, 0
        %v588 = vsel %vm529, %v352, 0
        %v591 = vsel %vm529, %v353, 0
        %v594 = vsel %vm529, %v354, 0
        %v597 = vsel %vm529, %v355, 0
        %v600 = vsel %vm529, %v356, 0
        %v603 = vsel %vm529, %v357, 0
        %v606 = vsel %vm529, %v358, 0
        %v609 = vsel %vm529, %v359, 0
        %v612 = vsel %vm529, %v360, 0
        %614 = vmatprep.subr.mxu0 0.0
        %615 = vmatpush1.msra.mxu0 %v331
        %616 = vmatprep.subr.mxu0 0.0
        %617 = vmatpush1.msra.mxu0 %v332
        %618 = vmatprep.subr.mxu0 0.0
        %619 = vmatpush1.msra.mxu0 0.0
        %620 = vmatprep.subr.mxu0 0.0
        %621 = vmatpush1.msra.mxu0 0.0
        %622 = vmatprep.subr.mxu0 0.0
        %623 = vmatpush1.msra.mxu0 0.0
        %624 = vmatprep.subr.mxu0 0.0
        %625 = vmatpush1.msra.mxu0 0.0
        %626 = vmatprep.subr.mxu0 0.0
        %627 = vmatpush1.msra.mxu0 0.0
        %628 = vmatprep.subr.mxu0 0.0
        %629 = vmatpush1.msra.mxu0 0.0
        %630 = vmatprep.subr.mxu0 0.0
        %631 = vmatpush1.msra.mxu0 0.0
        %632 = vmatprep.subr.mxu0 0.0
        %633 = vmatpush1.msra.mxu0 0.0
        %634 = vmatprep.subr.mxu0 0.0
        %635 = vmatpush1.msra.mxu0 0.0
        %636 = vmatprep.subr.mxu0 0.0
        %637 = vmatpush1.msra.mxu0 0.0
        %638 = vmatprep.subr.mxu0 0.0
        %639 = vmatpush1.msra.mxu0 0.0
        %640 = vmatprep.subr.mxu0 0.0
        %641 = vmatpush1.msra.mxu0 0.0
        %642 = vmatprep.subr.mxu0 0.0
        %643 = vmatpush1.msra.mxu0 0.0
        %644 = vmatprep.subr.mxu0 0.0
        %645 = vmatpush1.msra.mxu0 0.0
        %646 = vmatprep.subr.mxu0 0.0
        %647 = vmatpush1.msra.mxu0 0.0
        %648 = vmatprep.subr.mxu0 0.0
        %649 = vmatpush1.msra.mxu0 0.0
        %650 = vmatprep.subr.mxu0 0.0
        %651 = vmatpush1.msra.mxu0 0.0
        %652 = vmatprep.subr.mxu0 0.0
        %653 = vmatpush1.msra.mxu0 0.0
        %654 = vmatprep.subr.mxu0 0.0
        %655 = vmatpush1.msra.mxu0 0.0
        %656 = vmatprep.subr.mxu0 0.0
        %657 = vmatpush1.msra.mxu0 0.0
        %658 = vmatprep.subr.mxu0 0.0
        %659 = vmatpush1.msra.mxu0 0.0
        %660 = vmatprep.subr.mxu0 0.0
        %661 = vmatpush1.msra.mxu0 0.0
        %662 = vmatprep.subr.mxu0 0.0
        %663 = vmatpush1.msra.mxu0 0.0
        %664 = vmatprep.subr.mxu0 0.0
        %665 = vmatpush1.msra.mxu0 0.0
        %666 = vmatprep.subr.mxu0 0.0
        %667 = vmatpush1.msra.mxu0 0.0
        %668 = vmatprep.subr.mxu0 0.0
        %669 = vmatpush1.msra.mxu0 0.0
        %670 = vmatprep.subr.mxu0 0.0
        %671 = vmatpush1.msra.mxu0 0.0
        %672 = vmatprep.subr.mxu0 0.0
        %673 = vmatpush1.msra.mxu0 0.0
        %674 = vmatprep.subr.mxu0 0.0
        %675 = vmatpush1.msra.mxu0 0.0
        %676 = vmatprep.subr.mxu0 0.0
        %677 = vmatpush1.msra.mxu0 0.0
        %678 = vmatprep.mubr.f32.mxu0 0.0
        %679 = vmatmul.mubr.f32.gmra.mrb[0].mxu0 %v531
        %v680 = vpop.f32.mrb[0].mxu0
        %v681 = vadd.f32 %v392, %v680
        %v682 = vpop.f32.mrb[0].mxu0
        %683 = vmatprep.mubr.f32.mxu0 0.0
        %684 = vmatmul.mubr.f32.gmra.mrb[0].mxu0 %v534
        %v685 = vpop.f32.mrb[0].mxu0
        %v686 = vadd.f32 %v397, %v685
        %v687 = vpop.f32.mrb[0].mxu0
        %688 = vmatprep.mubr.f32.mxu0 0.0
        %689 = vmatmul.mubr.f32.gmra.mrb[0].mxu0 %v537
        %v690 = vpop.f32.mrb[0].mxu0
        %v691 = vadd.f32 %v402, %v690
        %v692 = vpop.f32.mrb[0].mxu0
        %693 = vmatprep.mubr.f32.mxu0 0.0
        %694 = vmatmul.mubr.f32.gmra.mrb[0].mxu0 %v540
        %v695 = vpop.f32.mrb[0].mxu0
        %v696 = vadd.f32 %v407, %v695
        %v697 = vpop.f32.mrb[0].mxu0
        %698 = vmatprep.mubr.f32.mxu0 0.0
        %699 = vmatmul.mubr.f32.gmra.mrb[0].mxu0 %v543
        %v700 = vpop.f32.mrb[0].mxu0
        %v701 = vadd.f32 %v412, %v700
        %v702 = vpop.f32.mrb[0].mxu0
        %703 = vmatprep.mubr.f32.mxu0 0.0
        %704 = vmatmul.mubr.f32.gmra.mrb[0].mxu0 %v546
        %v705 = vpop.f32.mrb[0].mxu0
        %v706 = vadd.f32 %v417, %v705
        %v707 = vpop.f32.mrb[0].mxu0
        %708 = vmatprep.mubr.f32.mxu0 0.0
        %709 = vmatmul.mubr.f32.gmra.mrb[0].mxu0 %v549
        %v710 = vpop.f32.mrb[0].mxu0
        %v711 = vadd.f32 %v422, %v710
        %v712 = vpop.f32.mrb[0].mxu0
        %713 = vmatprep.mubr.f32.mxu0 0.0
        %714 = vmatmul.mubr.f32.gmra.mrb[0].mxu0 %v552
        %v715 = vpop.f32.mrb[0].mxu0
        %v716 = vadd.f32 %v427, %v715
        %v717 = vpop.f32.mrb[0].mxu0
        %718 = vmatprep.mubr.f32.mxu0 0.0
        %719 = vmatmul.mubr.f32.gmra.mrb[0].mxu0 %v555
        %v720 = vpop.f32.mrb[0].mxu0
        %v721 = vadd.f32 %v432, %v720
        %v722 = vpop.f32.mrb[0].mxu0
        %723 = vmatprep.mubr.f32.mxu0 0.0
        %724 = vmatmul.mubr.f32.gmra.mrb[0].mxu0 %v558
        %v725 = vpop.f32.mrb[0].mxu0
        %v726 = vadd.f32 %v437, %v725
        %v727 = vpop.f32.mrb[0].mxu0
        %728 = vmatprep.mubr.f32.mxu0 0.0
        %729 = vmatmul.mubr.f32.gmra.mrb[0].mxu0 %v561
        %v730 = vpop.f32.mrb[0].mxu0
        %v731 = vadd.f32 %v442, %v730
        %v732 = vpop.f32.mrb[0].mxu0
        %733 = vmatprep.mubr.f32.mxu0 0.0
        %734 = vmatmul.mubr.f32.gmra.mrb[0].mxu0 %v564
        %v735 = vpop.f32.mrb[0].mxu0
        %v736 = vadd.f32 %v447, %v735
        %v737 = vpop.f32.mrb[0].mxu0
        %738 = vmatprep.mubr.f32.mxu0 0.0
        %739 = vmatmul.mubr.f32.gmra.mrb[0].mxu0 %v567
        %v740 = vpop.f32.mrb[0].mxu0
        %v741 = vadd.f32 %v452, %v740
        %v742 = vpop.f32.mrb[0].mxu0
        %743 = vmatprep.mubr.f32.mxu0 0.0
        %744 = vmatmul.mubr.f32.gmra.mrb[0].mxu0 %v570
        %v745 = vpop.f32.mrb[0].mxu0
        %v746 = vadd.f32 %v457, %v745
        %v747 = vpop.f32.mrb[0].mxu0
        %748 = vmatprep.mubr.f32.mxu0 0.0
        %749 = vmatmul.mubr.f32.gmra.mrb[0].mxu0 %v573
        %v750 = vpop.f32.mrb[0].mxu0
        %v751 = vadd.f32 %v462, %v750
        %v752 = vpop.f32.mrb[0].mxu0
        %753 = vmatprep.mubr.f32.mxu0 0.0
        %754 = vmatmul.mubr.f32.gmra.mrb[0].mxu0 %v576
        %v755 = vpop.f32.mrb[0].mxu0
        %v756 = vadd.f32 %v467, %v755
        %v757 = vpop.f32.mrb[0].mxu0
        %758 = vmatprep.mubr.f32.mxu0 0.0
        %759 = vmatmul.mubr.f32.gmra.mrb[0].mxu0 %v579
        %v760 = vpop.f32.mrb[0].mxu0
        %v761 = vadd.f32 %v472, %v760
        %v762 = vpop.f32.mrb[0].mxu0
        %763 = vmatprep.mubr.f32.mxu0 0.0
        %764 = vmatmul.mubr.f32.gmra.mrb[0].mxu0 %v582
        %v765 = vpop.f32.mrb[0].mxu0
        %v766 = vadd.f32 %v477, %v765
        %v767 = vpop.f32.mrb[0].mxu0
        %768 = vmatprep.mubr.f32.mxu0 0.0
        %769 = vmatmul.mubr.f32.gmra.mrb[0].mxu0 %v585
        %v770 = vpop.f32.mrb[0].mxu0
        %v771 = vadd.f32 %v482, %v770
        %v772 = vpop.f32.mrb[0].mxu0
        %773 = vmatprep.mubr.f32.mxu0 0.0
        %774 = vmatmul.mubr.f32.gmra.mrb[0].mxu0 %v588
        %v775 = vpop.f32.mrb[0].mxu0
        %v776 = vadd.f32 %v487, %v775
        %v777 = vpop.f32.mrb[0].mxu0
        %778 = vmatprep.mubr.f32.mxu0 0.0
        %779 = vmatmul.mubr.f32.gmra.mrb[0].mxu0 %v591
        %v780 = vpop.f32.mrb[0].mxu0
        %v781 = vadd.f32 %v492, %v780
        %v782 = vpop.f32.mrb[0].mxu0
        %783 = vmatprep.mubr.f32.mxu0 0.0
        %784 = vmatmul.mubr.f32.gmra.mrb[0].mxu0 %v594
        %v785 = vpop.f32.mrb[0].mxu0
        %v786 = vadd.f32 %v497, %v785
        %v787 = vpop.f32.mrb[0].mxu0
        %788 = vmatprep.mubr.f32.mxu0 0.0
        %789 = vmatmul.mubr.f32.gmra.mrb[0].mxu0 %v597
        %v790 = vpop.f32.mrb[0].mxu0
        %v791 = vadd.f32 %v502, %v790
        %v792 = vpop.f32.mrb[0].mxu0
        %793 = vmatprep.mubr.f32.mxu0 0.0
        %794 = vmatmul.mubr.f32.gmra.mrb[0].mxu0 %v600
        %v795 = vpop.f32.mrb[0].mxu0
        %v796 = vadd.f32 %v507, %v795
        %v797 = vpop.f32.mrb[0].mxu0
        %798 = vmatprep.mubr.f32.mxu0 0.0
        %799 = vmatmul.mubr.f32.gmra.mrb[0].mxu0 %v603
        %v800 = vpop.f32.mrb[0].mxu0
        %v801 = vadd.f32 %v512, %v800
        %v802 = vpop.f32.mrb[0].mxu0
        %803 = vmatprep.mubr.f32.mxu0 0.0
        %804 = vmatmul.mubr.f32.gmra.mrb[0].mxu0 %v606
        %v805 = vpop.f32.mrb[0].mxu0
        %v806 = vadd.f32 %v517, %v805
        %v807 = vpop.f32.mrb[0].mxu0
        %808 = vmatprep.mubr.f32.mxu0 0.0
        %809 = vmatmul.mubr.f32.gmra.mrb[0].mxu0 %v609
        %v810 = vpop.f32.mrb[0].mxu0
        %v811 = vadd.f32 %v522, %v810
        %v812 = vpop.f32.mrb[0].mxu0
        %813 = vmatprep.mubr.f32.mxu0 0.0
        %814 = vmatmul.mubr.f32.gmra.mrb[0].mxu0 %v612
        %v815 = vpop.f32.mrb[0].mxu0
        %v816 = vadd.f32 %v527, %v815
        %v817 = vpop.f32.mrb[0].mxu0
        %818 = vdwg.mxu0
        %v819 = vxor.u32 %v681, 2147483648
        %v820 = vxor.u32 %v686, 2147483648
        %v821 = vxor.u32 %v691, 2147483648
        %v822 = vxor.u32 %v696, 2147483648
        %v823 = vxor.u32 %v701, 2147483648
        %v824 = vxor.u32 %v706, 2147483648
        %v825 = vxor.u32 %v711, 2147483648
        %v826 = vxor.u32 %v716, 2147483648
        %v827 = vxor.u32 %v721, 2147483648
        %v828 = vxor.u32 %v726, 2147483648
        %v829 = vxor.u32 %v731, 2147483648
        %v830 = vxor.u32 %v736, 2147483648
        %v831 = vxor.u32 %v741, 2147483648
        %v832 = vxor.u32 %v746, 2147483648
        %v833 = vxor.u32 %v751, 2147483648
        %v834 = vxor.u32 %v756, 2147483648
        %v835 = vxor.u32 %v761, 2147483648
        %v836 = vxor.u32 %v766, 2147483648
        %v837 = vxor.u32 %v771, 2147483648
        %v838 = vxor.u32 %v776, 2147483648
        %v839 = vxor.u32 %v781, 2147483648
        %v840 = vxor.u32 %v786, 2147483648
        %v841 = vxor.u32 %v791, 2147483648
        %v842 = vxor.u32 %v796, 2147483648
        %v843 = vxor.u32 %v801, 2147483648
        %v844 = vxor.u32 %v806, 2147483648
        %v845 = vxor.u32 %v811, 2147483648
        %v846 = vxor.u32 %v816, 2147483648
        %v847 = vmul.f32 %v819, 1.442695
        %v848 = vpow.pop %v847
        %v849 = vmul.f32 %v820, 1.442695
        %v850 = vpow.pop %v849
        %v851 = vmul.f32 %v821, 1.442695
        %v852 = vpow.pop %v851
        %v853 = vmul.f32 %v822, 1.442695
        %v854 = vpow.pop %v853
        %v855 = vmul.f32 %v823, 1.442695
        %v856 = vpow.pop %v855
        %v857 = vmul.f32 %v824, 1.442695
        %v858 = vpow.pop %v857
        %v859 = vmul.f32 %v825, 1.442695
        %v860 = vpow.pop %v859
        %v861 = vmul.f32 %v826, 1.442695
        %v862 = vpow.pop %v861
        %v863 = vmul.f32 %v827, 1.442695
        %v864 = vpow.pop %v863
        %v865 = vmul.f32 %v828, 1.442695
        %v866 = vpow.pop %v865
        %v867 = vmul.f32 %v829, 1.442695
        %v868 = vpow.pop %v867
        %v869 = vmul.f32 %v830, 1.442695
        %v870 = vpow.pop %v869
        %v871 = vmul.f32 %v831, 1.442695
        %v872 = vpow.pop %v871
        %v873 = vmul.f32 %v832, 1.442695
        %v874 = vpow.pop %v873
        %v875 = vmul.f32 %v833, 1.442695
        %v876 = vpow.pop %v875
        %v877 = vmul.f32 %v834, 1.442695
        %v878 = vpow.pop %v877
        %v879 = vmul.f32 %v835, 1.442695
        %v880 = vpow.pop %v879
        %v881 = vmul.f32 %v836, 1.442695
        %v882 = vpow.pop %v881
        %v883 = vmul.f32 %v837, 1.442695
        %v884 = vpow.pop %v883
        %v885 = vmul.f32 %v838, 1.442695
        %v886 = vpow.pop %v885
        %v887 = vmul.f32 %v839, 1.442695
        %v888 = vpow.pop %v887
        %v889 = vmul.f32 %v840, 1.442695
        %v890 = vpow.pop %v889
        %v891 = vmul.f32 %v841, 1.442695
        %v892 = vpow.pop %v891
        %v893 = vmul.f32 %v842, 1.442695
        %v894 = vpow.pop %v893
        %v895 = vmul.f32 %v843, 1.442695
        %v896 = vpow.pop %v895
        %v897 = vmul.f32 %v844, 1.442695
        %v898 = vpow.pop %v897
        %v899 = vmul.f32 %v845, 1.442695
        %v900 = vpow.pop %v899
        %v901 = vmul.f32 %v846, 1.442695
        %v902 = vpow.pop %v901
        %v903 = vadd.f32 %v848, 1.0
        %v904 = vadd.f32 %v850, 1.0
        %v905 = vadd.f32 %v852, 1.0
        %v906 = vadd.f32 %v854, 1.0
        %v907 = vadd.f32 %v856, 1.0
        %v908 = vadd.f32 %v858, 1.0
        %v909 = vadd.f32 %v860, 1.0
        %v910 = vadd.f32 %v862, 1.0
        %v911 = vadd.f32 %v864, 1.0
        %v912 = vadd.f32 %v866, 1.0
        %v913 = vadd.f32 %v868, 1.0
        %v914 = vadd.f32 %v870, 1.0
        %v915 = vadd.f32 %v872, 1.0
        %v916 = vadd.f32 %v874, 1.0
        %v917 = vadd.f32 %v876, 1.0
        %v918 = vadd.f32 %v878, 1.0
        %v919 = vadd.f32 %v880, 1.0
        %v920 = vadd.f32 %v882, 1.0
        %v921 = vadd.f32 %v884, 1.0
        %v922 = vadd.f32 %v886, 1.0
        %v923 = vadd.f32 %v888, 1.0
        %v924 = vadd.f32 %v890, 1.0
        %v925 = vadd.f32 %v892, 1.0
        %v926 = vadd.f32 %v894, 1.0
        %v927 = vadd.f32 %v896, 1.0
        %v928 = vadd.f32 %v898, 1.0
        %v929 = vadd.f32 %v900, 1.0
        %v930 = vadd.f32 %v902, 1.0
        %v931 = vrcp.pop %v903
        %v932 = vmul.f32 1.0, %v931
        %v933 = vrcp.pop %v904
        %v934 = vmul.f32 1.0, %v933
        %v935 = vrcp.pop %v905
        %v936 = vmul.f32 1.0, %v935
        %v937 = vrcp.pop %v906
        %v938 = vmul.f32 1.0, %v937
        %v939 = vrcp.pop %v907
        %v940 = vmul.f32 1.0, %v939
        %v941 = vrcp.pop %v908
        %v942 = vmul.f32 1.0, %v941
        %v943 = vrcp.pop %v909
        %v944 = vmul.f32 1.0, %v943
        %v945 = vrcp.pop %v910
        %v946 = vmul.f32 1.0, %v945
        %v947 = vrcp.pop %v911
        %v948 = vmul.f32 1.0, %v947
        %v949 = vrcp.pop %v912
        %v950 = vmul.f32 1.0, %v949
        %v951 = vrcp.pop %v913
        %v952 = vmul.f32 1.0, %v951
        %v953 = vrcp.pop %v914
        %v954 = vmul.f32 1.0, %v953
        %v955 = vrcp.pop %v915
        %v956 = vmul.f32 1.0, %v955
        %v957 = vrcp.pop %v916
        %v958 = vmul.f32 1.0, %v957
        %v959 = vrcp.pop %v917
        %v960 = vmul.f32 1.0, %v959
        %v961 = vrcp.pop %v918
        %v962 = vmul.f32 1.0, %v961
        %v963 = vrcp.pop %v919
        %v964 = vmul.f32 1.0, %v963
        %v965 = vrcp.pop %v920
        %v966 = vmul.f32 1.0, %v965
        %v967 = vrcp.pop %v921
        %v968 = vmul.f32 1.0, %v967
        %v969 = vrcp.pop %v922
        %v970 = vmul.f32 1.0, %v969
        %v971 = vrcp.pop %v923
        %v972 = vmul.f32 1.0, %v971
        %v973 = vrcp.pop %v924
        %v974 = vmul.f32 1.0, %v973
        %v975 = vrcp.pop %v925
        %v976 = vmul.f32 1.0, %v975
        %v977 = vrcp.pop %v926
        %v978 = vmul.f32 1.0, %v977
        %v979 = vrcp.pop %v927
        %v980 = vmul.f32 1.0, %v979
        %v981 = vrcp.pop %v928
        %v982 = vmul.f32 1.0, %v981
        %v983 = vrcp.pop %v929
        %v984 = vmul.f32 1.0, %v983
        %v985 = vrcp.pop %v930
        %v986 = vmul.f32 1.0, %v985
        %v987 = vld [vmem:[%s3] sm:$0xff]
        %v988 = vld [vmem:[%s3 + $0x8] sm:$0xff]
        %v989 = vld [vmem:[%s3 + $0x10] sm:$0xff]
        %v990 = vld [vmem:[%s3 + $0x18] sm:$0xff]
        %v991 = vmul.f32 %v932, %v940
        %v992 = vmul.f32 %v934, %v942
        %v993 = vmul.f32 %v936, %v944
        %v994 = vmul.f32 %v938, %v946
        %v995 = vmul.f32 %v991, %v956
        %v996 = vmul.f32 %v992, %v958
        %v997 = vmul.f32 %v993, %v960
        %v998 = vmul.f32 %v994, %v962
        %1000 = vset.pattern.permute.xlu0 0
        %1001 = vperm.xlu0 %1000, %v987
        %v1002 = vpop.permute.xlu0 %1001
        %1005 = vset.pattern.permute.xlu0 0
        %1006 = vperm.xlu0 %1005, %v988
        %v1007 = vpop.permute.xlu0 %1006
        %1010 = vset.pattern.permute.xlu0 0
        %1011 = vperm.xlu0 %1010, %v989
        %v1012 = vpop.permute.xlu0 %1011
        %1015 = vset.pattern.permute.xlu0 0
        %1016 = vperm.xlu0 %1015, %v990
        %v1017 = vpop.permute.xlu0 %1016
        %v1019 = vmul.f32 %v995, %v1002
        %v1020 = vmul.f32 %v996, %v1007
        %v1021 = vmul.f32 %v997, %v1012
        %v1022 = vmul.f32 %v998, %v1017
        %v1023 = vadd.f32 %v1019, 0.0
        %v1024 = vadd.f32 %v1020, 0.0
        %v1025 = vadd.f32 %v1021, 0.0
        %v1026 = vadd.f32 %v1022, 0.0
        %v1027 = vsub.f32 1.0, %v956
        %v1028 = vsub.f32 1.0, %v958
        %v1029 = vsub.f32 1.0, %v960
        %v1030 = vsub.f32 1.0, %v962
        %v1031 = vmul.f32 %v991, %v1027
        %v1032 = vmul.f32 %v992, %v1028
        %v1033 = vmul.f32 %v993, %v1029
        %v1034 = vmul.f32 %v994, %v1030
        %1035 = vset.pattern.permute.xlu0 1
        %1036 = vperm.xlu0 %1035, %v987
        %v1037 = vpop.permute.xlu0 %1036
        %1039 = vset.pattern.permute.xlu0 1
        %1040 = vperm.xlu0 %1039, %v988
        %v1041 = vpop.permute.xlu0 %1040
        %1043 = vset.pattern.permute.xlu0 1
        %1044 = vperm.xlu0 %1043, %v989
        %v1045 = vpop.permute.xlu0 %1044
        %1047 = vset.pattern.permute.xlu0 1
        %1048 = vperm.xlu0 %1047, %v990
        %v1049 = vpop.permute.xlu0 %1048
        %v1051 = vmul.f32 %v1031, %v1037
        %v1052 = vmul.f32 %v1032, %v1041
        %v1053 = vmul.f32 %v1033, %v1045
        %v1054 = vmul.f32 %v1034, %v1049
        %v1055 = vadd.f32 %v1023, %v1051
        %v1056 = vadd.f32 %v1024, %v1052
        %v1057 = vadd.f32 %v1025, %v1053
        %v1058 = vadd.f32 %v1026, %v1054
        %v1059 = vsub.f32 1.0, %v940
        %v1060 = vsub.f32 1.0, %v942
        %v1061 = vsub.f32 1.0, %v944
        %v1062 = vsub.f32 1.0, %v946
        %v1063 = vmul.f32 %v932, %v1059
        %v1064 = vmul.f32 %v934, %v1060
        %v1065 = vmul.f32 %v936, %v1061
        %v1066 = vmul.f32 %v938, %v1062
        %v1067 = vmul.f32 %v1063, %v964
        %v1068 = vmul.f32 %v1064, %v966
        %v1069 = vmul.f32 %v1065, %v968
        %v1070 = vmul.f32 %v1066, %v970
        %1071 = vset.pattern.permute.xlu0 2
        %1072 = vperm.xlu0 %1071, %v987
        %v1073 = vpop.permute.xlu0 %1072
        %1075 = vset.pattern.permute.xlu0 2
        %1076 = vperm.xlu0 %1075, %v988
        %v1077 = vpop.permute.xlu0 %1076
        %1079 = vset.pattern.permute.xlu0 2
        %1080 = vperm.xlu0 %1079, %v989
        %v1081 = vpop.permute.xlu0 %1080
        %1083 = vset.pattern.permute.xlu0 2
        %1084 = vperm.xlu0 %1083, %v990
        %v1085 = vpop.permute.xlu0 %1084
        %v1087 = vmul.f32 %v1067, %v1073
        %v1088 = vmul.f32 %v1068, %v1077
        %v1089 = vmul.f32 %v1069, %v1081
        %v1090 = vmul.f32 %v1070, %v1085
        %v1091 = vadd.f32 %v1055, %v1087
        %v1092 = vadd.f32 %v1056, %v1088
        %v1093 = vadd.f32 %v1057, %v1089
        %v1094 = vadd.f32 %v1058, %v1090
        %v1095 = vsub.f32 1.0, %v964
        %v1096 = vsub.f32 1.0, %v966
        %v1097 = vsub.f32 1.0, %v968
        %v1098 = vsub.f32 1.0, %v970
        %v1099 = vmul.f32 %v1063, %v1095
        %v1100 = vmul.f32 %v1064, %v1096
        %v1101 = vmul.f32 %v1065, %v1097
        %v1102 = vmul.f32 %v1066, %v1098
        %1103 = vset.pattern.permute.xlu0 3
        %1104 = vperm.xlu0 %1103, %v987
        %v1105 = vpop.permute.xlu0 %1104
        %1107 = vset.pattern.permute.xlu0 3
        %1108 = vperm.xlu0 %1107, %v988
        %v1109 = vpop.permute.xlu0 %1108
        %1111 = vset.pattern.permute.xlu0 3
        %1112 = vperm.xlu0 %1111, %v989
        %v1113 = vpop.permute.xlu0 %1112
        %1115 = vset.pattern.permute.xlu0 3
        %1116 = vperm.xlu0 %1115, %v990
        %v1117 = vpop.permute.xlu0 %1116
        %v1119 = vmul.f32 %v1099, %v1105
        %v1120 = vmul.f32 %v1100, %v1109
        %v1121 = vmul.f32 %v1101, %v1113
        %v1122 = vmul.f32 %v1102, %v1117
        %v1123 = vadd.f32 %v1091, %v1119
        %v1124 = vadd.f32 %v1092, %v1120
        %v1125 = vadd.f32 %v1093, %v1121
        %v1126 = vadd.f32 %v1094, %v1122
        %v1127 = vsub.f32 1.0, %v932
        %v1128 = vsub.f32 1.0, %v934
        %v1129 = vsub.f32 1.0, %v936
        %v1130 = vsub.f32 1.0, %v938
        %v1131 = vmul.f32 %v1127, %v948
        %v1132 = vmul.f32 %v1128, %v950
        %v1133 = vmul.f32 %v1129, %v952
        %v1134 = vmul.f32 %v1130, %v954
        %v1135 = vmul.f32 %v1131, %v972
        %v1136 = vmul.f32 %v1132, %v974
        %v1137 = vmul.f32 %v1133, %v976
        %v1138 = vmul.f32 %v1134, %v978
        %1139 = vset.pattern.permute.xlu0 4
        %1140 = vperm.xlu0 %1139, %v987
        %v1141 = vpop.permute.xlu0 %1140
        %1143 = vset.pattern.permute.xlu0 4
        %1144 = vperm.xlu0 %1143, %v988
        %v1145 = vpop.permute.xlu0 %1144
        %1147 = vset.pattern.permute.xlu0 4
        %1148 = vperm.xlu0 %1147, %v989
        %v1149 = vpop.permute.xlu0 %1148
        %1151 = vset.pattern.permute.xlu0 4
        %1152 = vperm.xlu0 %1151, %v990
        %v1153 = vpop.permute.xlu0 %1152
        %v1155 = vmul.f32 %v1135, %v1141
        %v1156 = vmul.f32 %v1136, %v1145
        %v1157 = vmul.f32 %v1137, %v1149
        %v1158 = vmul.f32 %v1138, %v1153
        %v1159 = vadd.f32 %v1123, %v1155
        %v1160 = vadd.f32 %v1124, %v1156
        %v1161 = vadd.f32 %v1125, %v1157
        %v1162 = vadd.f32 %v1126, %v1158
        %v1163 = vsub.f32 1.0, %v972
        %v1164 = vsub.f32 1.0, %v974
        %v1165 = vsub.f32 1.0, %v976
        %v1166 = vsub.f32 1.0, %v978
        %v1167 = vmul.f32 %v1131, %v1163
        %v1168 = vmul.f32 %v1132, %v1164
        %v1169 = vmul.f32 %v1133, %v1165
        %v1170 = vmul.f32 %v1134, %v1166
        %1171 = vset.pattern.permute.xlu0 5
        %1172 = vperm.xlu0 %1171, %v987
        %v1173 = vpop.permute.xlu0 %1172
        %1175 = vset.pattern.permute.xlu0 5
        %1176 = vperm.xlu0 %1175, %v988
        %v1177 = vpop.permute.xlu0 %1176
        %1179 = vset.pattern.permute.xlu0 5
        %1180 = vperm.xlu0 %1179, %v989
        %v1181 = vpop.permute.xlu0 %1180
        %1183 = vset.pattern.permute.xlu0 5
        %1184 = vperm.xlu0 %1183, %v990
        %v1185 = vpop.permute.xlu0 %1184
        %v1187 = vmul.f32 %v1167, %v1173
        %v1188 = vmul.f32 %v1168, %v1177
        %v1189 = vmul.f32 %v1169, %v1181
        %v1190 = vmul.f32 %v1170, %v1185
        %v1191 = vadd.f32 %v1159, %v1187
        %v1192 = vadd.f32 %v1160, %v1188
        %v1193 = vadd.f32 %v1161, %v1189
        %v1194 = vadd.f32 %v1162, %v1190
        %v1195 = vsub.f32 1.0, %v948
        %v1196 = vsub.f32 1.0, %v950
        %v1197 = vsub.f32 1.0, %v952
        %v1198 = vsub.f32 1.0, %v954
        %v1199 = vmul.f32 %v1127, %v1195
        %v1200 = vmul.f32 %v1128, %v1196
        %v1201 = vmul.f32 %v1129, %v1197
        %v1202 = vmul.f32 %v1130, %v1198
        %v1203 = vmul.f32 %v1199, %v980
        %v1204 = vmul.f32 %v1200, %v982
        %v1205 = vmul.f32 %v1201, %v984
        %v1206 = vmul.f32 %v1202, %v986
        %1207 = vset.pattern.permute.xlu0 6
        %1208 = vperm.xlu0 %1207, %v987
        %v1209 = vpop.permute.xlu0 %1208
        %1211 = vset.pattern.permute.xlu0 6
        %1212 = vperm.xlu0 %1211, %v988
        %v1213 = vpop.permute.xlu0 %1212
        %1215 = vset.pattern.permute.xlu0 6
        %1216 = vperm.xlu0 %1215, %v989
        %v1217 = vpop.permute.xlu0 %1216
        %1219 = vset.pattern.permute.xlu0 6
        %1220 = vperm.xlu0 %1219, %v990
        %v1221 = vpop.permute.xlu0 %1220
        %v1223 = vmul.f32 %v1203, %v1209
        %v1224 = vmul.f32 %v1204, %v1213
        %v1225 = vmul.f32 %v1205, %v1217
        %v1226 = vmul.f32 %v1206, %v1221
        %v1227 = vadd.f32 %v1191, %v1223
        %v1228 = vadd.f32 %v1192, %v1224
        %v1229 = vadd.f32 %v1193, %v1225
        %v1230 = vadd.f32 %v1194, %v1226
        %v1231 = vsub.f32 1.0, %v980
        %v1232 = vsub.f32 1.0, %v982
        %v1233 = vsub.f32 1.0, %v984
        %v1234 = vsub.f32 1.0, %v986
        %v1235 = vmul.f32 %v1199, %v1231
        %v1236 = vmul.f32 %v1200, %v1232
        %v1237 = vmul.f32 %v1201, %v1233
        %v1238 = vmul.f32 %v1202, %v1234
        %1239 = vset.pattern.permute.xlu0 7
        %1240 = vperm.xlu0 %1239, %v987
        %v1241 = vpop.permute.xlu0 %1240
        %1243 = vset.pattern.permute.xlu0 7
        %1244 = vperm.xlu0 %1243, %v988
        %v1245 = vpop.permute.xlu0 %1244
        %1247 = vset.pattern.permute.xlu0 7
        %1248 = vperm.xlu0 %1247, %v989
        %v1249 = vpop.permute.xlu0 %1248
        %1251 = vset.pattern.permute.xlu0 7
        %1252 = vperm.xlu0 %1251, %v990
        %v1253 = vpop.permute.xlu0 %1252
        %v1255 = vmul.f32 %v1235, %v1241
        %v1256 = vmul.f32 %v1236, %v1245
        %v1257 = vmul.f32 %v1237, %v1249
        %v1258 = vmul.f32 %v1238, %v1253
        %v1259 = vadd.f32 %v1227, %v1255
        %v1260 = vadd.f32 %v1228, %v1256
        %v1261 = vadd.f32 %v1229, %v1257
        %v1262 = vadd.f32 %v1230, %v1258
        %1263 = vst [vmem:[%s324] sm:$0xff] %v1259
        %1264 = vst [vmem:[%s324 + $0x8] sm:$0xff] %v1260
        %1265 = vst [vmem:[%s324 + $0x10] sm:$0xff] %v1261
        %1266 = vst [vmem:[%s324 + $0x18] sm:$0xff] %v1262
        %v1267 = vld [vmem:[%s4] sm:$0xff]
        %v1268 = vld [vmem:[%s4 + $0x8] sm:$0xff]
        %v1269 = vld [vmem:[%s4 + $0x10] sm:$0xff]
        %v1270 = vld [vmem:[%s4 + $0x18] sm:$0xff]
        %1272 = vset.pattern.permute.xlu0 0
        %1273 = vperm.xlu0 %1272, %v1267
        %v1274 = vpop.permute.xlu0 %1273
        %1277 = vset.pattern.permute.xlu0 0
        %1278 = vperm.xlu0 %1277, %v1268
        %v1279 = vpop.permute.xlu0 %1278
        %1282 = vset.pattern.permute.xlu0 0
        %1283 = vperm.xlu0 %1282, %v1269
        %v1284 = vpop.permute.xlu0 %1283
        %1287 = vset.pattern.permute.xlu0 0
        %1288 = vperm.xlu0 %1287, %v1270
        %v1289 = vpop.permute.xlu0 %1288
        %v1291 = vmul.f32 %v1259, %v1274
        %v1292 = vmul.f32 %v1260, %v1279
        %v1293 = vmul.f32 %v1261, %v1284
        %v1294 = vmul.f32 %v1262, %v1289
        %v1295 = vadd.f32 %v1291, %v1292
        %v1296 = vadd.f32 %v1295, %v1293
        %v1297 = vadd.f32 %v1296, %v1294
        %v1298 = vrot.slane %v1297, 4
        %v1299 = vadd.f32 %v1297, %v1298
        %v1300 = vrot.slane %v1299, 2
        %v1301 = vadd.f32 %v1299, %v1300
        %v1302 = vrot.slane %v1301, 1
        %v1303 = vadd.f32 %v1301, %v1302
        %1304 = vst [vmem:[%s317] sm:$0x1] %v1303
        %vm1305 = vcmp.gt.f32.partialorder %v1259, 0.0
        %vm1306 = vcmp.gt.f32.partialorder %v1260, 0.0
        %vm1307 = vcmp.gt.f32.partialorder %v1261, 0.0
        %vm1308 = vcmp.gt.f32.partialorder %v1262, 0.0
        %vm1309 = vcmp.lt.f32.partialorder %v1259, 0.0
        %vm1310 = vcmp.lt.f32.partialorder %v1260, 0.0
        %vm1311 = vcmp.lt.f32.partialorder %v1261, 0.0
        %vm1312 = vcmp.lt.f32.partialorder %v1262, 0.0
        %v1313 = vsel %vm1309, -1.0, 0.0
        %v1314 = vsel %vm1310, -1.0, 0.0
        %v1315 = vsel %vm1311, -1.0, 0.0
        %v1316 = vsel %vm1312, -1.0, 0.0
        %v1317 = vsel %vm1305, 1.0, %v1313
        %v1318 = vsel %vm1306, 1.0, %v1314
        %v1319 = vsel %vm1307, 1.0, %v1315
        %v1320 = vsel %vm1308, 1.0, %v1316
        %v1321 = vmul.f32 %v1317, %v1274
        %v1322 = vmul.f32 %v1318, %v1279
        %v1323 = vmul.f32 %v1319, %v1284
        %v1324 = vmul.f32 %v1320, %v1289
        %v1325 = vadd.f32 %v1321, %v1322
        %v1326 = vadd.f32 %v1325, %v1323
        %v1327 = vadd.f32 %v1326, %v1324
        %v1328 = vrot.slane %v1327, 4
        %v1329 = vadd.f32 %v1327, %v1328
        %v1330 = vrot.slane %v1329, 2
        %v1331 = vadd.f32 %v1329, %v1330
        %v1332 = vrot.slane %v1331, 1
        %v1333 = vadd.f32 %v1331, %v1332
        %vm1334 = vcmp.gt.f32.partialorder %v1333, 0.0
        %vm1335 = vcmp.lt.f32.partialorder %v1333, 0.0
        %v1336 = vsel %vm1335, -1.0, 0.0
        %v1337 = vsel %vm1334, 1.0, %v1336
        %v1338 = vcvt.f32.s32.to.zero.pseudo %v1337
        %1339 = vst [vmem:[%s330] sm:$0x1] %v1338
        %s1340 = sand.u32 %s143, 1
        %s1341 = scalar_lea.sflag [#allocation4], %s1340
        %s1342 = sand.u32 %s143, 1
        %s1343 = scalar_lea.vmem [#allocation3], %s1342
        %s1344 = sand.u32 %s25, 1
        %s1345 = scalar_lea.sflag [#allocation6], %s1344
        %s1346 = sand.u32 %s169, 1
        %s1347 = smul.addr %s1346, 32
        %s1348 = scalar_lea.vmem [#allocation5], %s1347
        %s1349 = sand.u32 %s25, 1
        %s1350 = scalar_lea.sflag [#allocation6], %s1349
        %s1351 = sand.u32 %s195, 1
        %s1352 = scalar_lea.vmem [#allocation7], %s1351
        // Predicated region
        $region79: #{tpu_custom_call.1} parent=73 // pred_check
          %p1353 = pneg %p153
        $region80: #{tpu_custom_call.1} parent=73 // pred_check_branch
          %1355 = sbr.rel (%p1353) target = $region82
        $region81: #{tpu_custom_call.1} parent=73 // pred_region
          %s1357 = ssub.s32 16, 16
          %1358 = vsyncadd %s1341, %s1357
          %s1359 = smul.addr %s25, 16
          %s1360 = scalar_lea.hbm %s5, %s1359
          %s1362 = sshll.u32 %s1343, 4
          %s1363 = int_to_ptr.vmem [resolvable:$true] %s1362
          %1365 = dma.vmem_to_hbm [thread:$0]  %s1363, 16, %s1360, %s1341
        $region82: #{tpu_custom_call.1} parent=73 // pred_fallthru
          _
        // Predicated region
        $region83: #{tpu_custom_call.1} parent=73 // pred_check
          %p1366 = pneg %p179
        $region84: #{tpu_custom_call.1} parent=73 // pred_check_branch
          %1368 = sbr.rel (%p1366) target = $region86
        $region85: #{tpu_custom_call.1} parent=73 // pred_region
          %s1370 = ssub.s32 512, 512
          %1371 = vsyncadd %s1345, %s1370
          %s1372 = smul.addr %s25, 128
          %s1373 = scalar_lea.hbm %s6, %s1372
          %s1374 = sshll.u32 %s1348, 4
          %s1375 = int_to_ptr.vmem [resolvable:$true] %s1374
          %1380 = dma.vmem_to_hbm [thread:$0]  %s1375, 512, %s1373, %s1345, 128, 256, 8
        $region86: #{tpu_custom_call.1} parent=73 // pred_fallthru
          _
        // Predicated region
        $region87: #{tpu_custom_call.1} parent=73 // pred_check
          %p1381 = pneg %p205
        $region88: #{tpu_custom_call.1} parent=73 // pred_check_branch
          %1383 = sbr.rel (%p1381) target = $region90
        $region89: #{tpu_custom_call.1} parent=73 // pred_region
          %s1385 = ssub.s32 16, 16
          %1386 = vsyncadd %s1350, %s1385
          %s1387 = smul.addr %s25, 16
          %s1388 = scalar_lea.hbm %s7, %s1387
          %s1390 = sshll.u32 %s1352, 4
          %s1391 = int_to_ptr.vmem [resolvable:$true] %s1390
          %1393 = dma.vmem_to_hbm [thread:$0]  %s1391, 16, %s1388, %s1350
        $region90: #{tpu_custom_call.1} parent=73 // pred_fallthru
          _
      $region74: #{tpu_custom_call.1} parent=5 // pred_fallthru
        _
      %p1394 = scmp.le.s32.totalorder 2, %s20
      // Predicated region
      $region91: #{tpu_custom_call.1} parent=5 // pred_check
        %p1395 = pneg %p1394
      $region92: #{tpu_custom_call.1} parent=5 // pred_check_branch
        %1397 = sbr.rel (%p1395) target = $region94
      $region93: #{tpu_custom_call.1} parent=5 // pred_region
        %s1398 = ssub.s32 %s20, 2
        // Predicated region
        $region95: #{tpu_custom_call.1} parent=93 // pred_check
          %p1399 = pneg %p159
        $region96: #{tpu_custom_call.1} parent=93 // pred_check_branch
          %1401 = sbr.rel (%p1399) target = $region98
        $region97: #{tpu_custom_call.1} parent=93 // pred_region
          %s1402 = sand.u32 %s144, 1
          %s1403 = scalar_lea.sflag [#allocation4], %s1402
          %s1404 = sand.u32 %s144, 1
          %s1405 = scalar_lea.vmem [#allocation3], %s1404
          %1406 = dma.done %s1403, 16
        $region98: #{tpu_custom_call.1} parent=93 // pred_fallthru
          _
        // Predicated region
        $region99: #{tpu_custom_call.1} parent=93 // pred_check
          %p1407 = pneg %p185
        $region100: #{tpu_custom_call.1} parent=93 // pred_check_branch
          %1409 = sbr.rel (%p1407) target = $region102
        $region101: #{tpu_custom_call.1} parent=93 // pred_region
          %s1410 = sand.u32 %s26, 1
          %s1411 = scalar_lea.sflag [#allocation6], %s1410
          %s1412 = sand.u32 %s170, 1
          %s1413 = smul.addr %s1412, 32
          %s1414 = scalar_lea.vmem [#allocation5], %s1413
          %1415 = dma.done %s1411, 512
        $region102: #{tpu_custom_call.1} parent=93 // pred_fallthru
          _
        // Predicated region
        $region103: #{tpu_custom_call.1} parent=93 // pred_check
          %p1416 = pneg %p211
        $region104: #{tpu_custom_call.1} parent=93 // pred_check_branch
          %1418 = sbr.rel (%p1416) target = $region106
        $region105: #{tpu_custom_call.1} parent=93 // pred_region
          %s1419 = sand.u32 %s26, 1
          %s1420 = scalar_lea.sflag [#allocation6], %s1419
          %s1421 = sand.u32 %s196, 1
          %s1422 = scalar_lea.vmem [#allocation7], %s1421
          %1423 = dma.done %s1420, 16
        $region106: #{tpu_custom_call.1} parent=93 // pred_fallthru
          _
      $region94: #{tpu_custom_call.1} parent=5 // pred_fallthru
        _
    $region6: #{tpu_custom_call.1} parent=1 // loop_footer
      %s24 = sadd.s32 1, %s20
    $region7: #{tpu_custom_call.1} parent=1 // loop_footer_branch
      %19 = sbr.rel target = $region3
    $region8: #{tpu_custom_call.1} parent=1 // loop_exit
      _
    %1424 = vsyncpa [#allocation4], 1
    %s1425 = scalar_lea.sflag [#allocation4], 1
    %1426 = vsyncpa %s1425, 1
    %1427 = vsyncpa [#allocation6], 1
    %s1428 = scalar_lea.sflag [#allocation6], 1
    %1429 = vsyncpa %s1428, 1

</llo_original>
